<compile_context>
chip_gen: v7x
topology: tpu7x:2x2x1
jax: 0.10.0
libtpu: 0.0.40
codegen_flags: <defaults>
</compile_context>

<pallas_src>
import math
import functools

import jax
import jax.numpy as jnp
from jax.experimental import pallas as pl
from jax.experimental.pallas import tpu as pltpu

# ---- config (mirrors the PyTorch module's __init__) -------------------------
NUM_HEADS = 4
HEAD_SIZE = 8
HIDDEN = NUM_HEADS * HEAD_SIZE        # all_head_size == config.hidden_size == 32
Q_DIM = HIDDEN                        # q_dim must equal hidden_size (residual in BertSelfOutput)
KV_DIM = 16                           # k_v_dim
LN_EPS = 1e-12                        # BERT LayerNorm default

# ---- packed-weight row layout (dim 1 of the (H, PACK_ROWS, D) bf16 buffer) ----
_WQ0, _WQ1 = 0, Q_DIM                       # [ 0:32)  Wq  head-major, pre-scaled by 1/sqrt(D)
_WK0, _WK1 = _WQ1, _WQ1 + KV_DIM            # [32:48)  Wk  head-major
_WV0, _WV1 = _WK1, _WK1 + KV_DIM            # [48:64)  Wv  head-major
_WO0, _WO1 = _WV1, _WV1 + HIDDEN            # [64:96)  Wo^T head-major
_BQ, _BK, _BV = _WO1, _WO1 + 1, _WO1 + 2    # rows 96/97/98: per-head q/k/v biases
PACK_ROWS = 104                             # padded to a multiple of 8 sublanes


# ---- the single fused kernel (one grid step == one batch element) ------------
def _fused_kernel(hs_ref, ihs_ref, mask_ref, w_ref, vec_ref, o_ref, *, H, Lq, Lkv):
    hs = hs_ref[...]                                    # (Lq, HIDDEN) f32 (residual path)
    hs_b = hs.astype(jnp.bfloat16)                      # bf16 MXU input
    ihs_b = ihs_ref[...].astype(jnp.bfloat16)           # (Lkv, KV_DIM)

    # Static, sublane-aligned views of the packed head-major weights (bf16).
    wq = w_ref[:, _WQ0:_WQ1, :]                         # (H, Q_DIM, D)  (already / sqrt(D))
    wk = w_ref[:, _WK0:_WK1, :]                         # (H, KV_DIM, D)
    wv = w_ref[:, _WV0:_WV1, :]                         # (H, KV_DIM, D)
    wo = w_ref[:, _WO0:_WO1, :]                         # (H, HIDDEN, D) == per-head Wo^T
    bq = w_ref[:, _BQ:_BQ + 1, :].astype(jnp.float32)   # (H, 1, D)
    bk = w_ref[:, _BK:_BK + 1, :].astype(jnp.float32)
    bv = w_ref[:, _BV:_BV + 1, :].astype(jnp.float32)

    # Projections as leading-batch (head) matmuls: bf16 MXU inputs, f32 accumulation.
    hsb = jnp.broadcast_to(hs_b[None], (H, Lq, hs_b.shape[-1]))
    ihsb = jnp.broadcast_to(ihs_b[None], (H, Lkv, ihs_b.shape[-1]))
    q = jnp.einsum("hqc,hcd->hqd", hsb, wq, preferred_element_type=jnp.float32) + bq
    k = jnp.einsum("hkc,hcd->hkd", ihsb, wk, preferred_element_type=jnp.float32) + bk
    v = jnp.einsum("hkc,hcd->hkd", ihsb, wv, preferred_element_type=jnp.float32) + bv

    # Scores + additive BERT mask + exact softmax (all f32).
    s = jnp.einsum("hqd,hkd->hqk", q.astype(jnp.bfloat16), k.astype(jnp.bfloat16),
                   preferred_element_type=jnp.float32)              # (H, Lq, Lkv)
    s = s + mask_ref[0]                                             # (1, Lkv) broadcast
    m = jnp.max(s, axis=-1, keepdims=True)
    p = jnp.exp(s - m)
    probs = p / jnp.sum(p, axis=-1, keepdims=True)                  # exact normalization
    # TODO(synk): nn.Dropout(attention_probs_dropout_prob) is identity in eval; not emitted.

    # Context + output dense, still head-batched (no transposes / lane concats).
    ctx = jnp.einsum("hqk,hkd->hqd", probs.astype(jnp.bfloat16), v.astype(jnp.bfloat16),
                     preferred_element_type=jnp.float32)            # (H, Lq, D)
    yh = jnp.einsum("hqd,hod->hqo", ctx.astype(jnp.bfloat16), wo,
                    preferred_element_type=jnp.float32)             # (H, Lq, HIDDEN)

    # BertSelfOutput: dense (summed over heads) + bias + residual + LayerNorm, all f32.
    y = jnp.sum(yh, axis=0) + vec_ref[0:1, :] + hs                  # (Lq, HIDDEN)
    mean = jnp.mean(y, axis=-1, keepdims=True)
    var = jnp.mean(jnp.square(y - mean), axis=-1, keepdims=True)
    o_ref[...] = (y - mean) * jax.lax.rsqrt(var + LN_EPS) * vec_ref[1:2, :] + vec_ref[2:3, :]


def _fused_call(hs2, ihs2, mask3, wpack, out_vecs, *, B, Lq, Lkv):
    H, D = NUM_HEADS, HEAD_SIZE
    kern = functools.partial(_fused_kernel, H=H, Lq=Lq, Lkv=Lkv)
    return pl.pallas_call(
        kern,
        out_shape=jax.ShapeDtypeStruct((B * Lq, HIDDEN), jnp.float32),
        grid=(B,),                                      # "parallel" -> megacore sharding on v7x
        in_specs=[
            pl.BlockSpec((Lq, Q_DIM), lambda b: (b, 0)),
            pl.BlockSpec((Lkv, KV_DIM), lambda b: (b, 0)),
            pl.BlockSpec((1, 1, Lkv), lambda b: (b, 0, 0)),
            pl.BlockSpec((H, PACK_ROWS, D), lambda b: (0, 0, 0)),   # weights stay resident
            pl.BlockSpec((3, HIDDEN), lambda b: (0, 0)),
        ],
        out_specs=pl.BlockSpec((Lq, HIDDEN), lambda b: (b, 0)),
        compiler_params=pltpu.CompilerParams(dimension_semantics=("parallel",)),
    )(hs2, ihs2, mask3, wpack, out_vecs)


# ---- one-time parameter packing (offline in production) ----------------------
def pack_params(params):
    """Collapse the module's 10 parameter arrays into two kernel operands."""
    H, D = NUM_HEADS, HEAD_SIZE
    scale = 1.0 / math.sqrt(D)

    def head_major(w):                                  # (in, H*D) -> (H, in, D)
        return w.reshape(w.shape[0], H, D).transpose(1, 0, 2)

    wq_h = head_major(params["q_w"] * scale)            # fold score scale into Wq/bq
    wk_h = head_major(params["k_w"])
    wv_h = head_major(params["v_w"])
    wo_h = params["o_w"].reshape(H, D, HIDDEN).transpose(0, 2, 1)    # (H, HIDDEN, D)

    wpack = jnp.zeros((H, PACK_ROWS, D), jnp.float32)
    wpack = wpack.at[:, _WQ0:_WQ1, :].set(wq_h)
    wpack = wpack.at[:, _WK0:_WK1, :].set(wk_h)
    wpack = wpack.at[:, _WV0:_WV1, :].set(wv_h)
    wpack = wpack.at[:, _WO0:_WO1, :].set(wo_h)
    wpack = wpack.at[:, _BQ, :].set((params["q_b"][0] * scale).reshape(H, D))
    wpack = wpack.at[:, _BK, :].set(params["k_b"][0].reshape(H, D))
    wpack = wpack.at[:, _BV, :].set(params["v_b"][0].reshape(H, D))
    wpack = wpack.astype(jnp.bfloat16)                  # bf16 MXU weights

    out_vecs = jnp.concatenate(                         # f32: [bo; gamma; beta]
        [params["o_b"], params["ln_g"], params["ln_b"]], axis=0)     # (3, HIDDEN)
    return wpack, out_vecs


# ---- full forward (thin JAX wrapper) ------------------------------------------
@jax.jit
def inject_cross_attention_forward(wpack, out_vecs, hidden_states,
                                   injected_hidden_states, injected_attention_mask):
    B, Lq, q_dim = hidden_states.shape
    _, Lkv, kv_dim = injected_hidden_states.shape
    hs2 = hidden_states.reshape(B * Lq, q_dim)
    ihs2 = injected_hidden_states.reshape(B * Lkv, kv_dim)
    # (B,1,1,Lkv) additive mask -> (B,1,Lkv).
    # TODO(synk): assumes the standard BERT mask (no query-position dependence).
    mask3 = injected_attention_mask.reshape(B, 1, Lkv)

    out = _fused_call(hs2, ihs2, mask3, wpack, out_vecs, B=B, Lq=Lq, Lkv=Lkv)
    return out.reshape(B, Lq, HIDDEN)


# ---- pure-JAX f32 reference for verification ----------------------------------
def reference_forward(params, hs, ihs, mask):
    B, Lq, _ = hs.shape
    Lkv = ihs.shape[1]
    H, D = NUM_HEADS, HEAD_SIZE

    def lin(x, w, b):
        return x @ w + b[0]

    q = lin(hs, params["q_w"], params["q_b"]).reshape(B, Lq, H, D).transpose(0, 2, 1, 3)
    k = lin(ihs, params["k_w"], params["k_b"]).reshape(B, Lkv, H, D).transpose(0, 2, 1, 3)
    v = lin(ihs, params["v_w"], params["v_b"]).reshape(B, Lkv, H, D).transpose(0, 2, 1, 3)
    scores = jnp.einsum("bhqd,bhkd->bhqk", q, k) / math.sqrt(D) + mask
    probs = jax.nn.softmax(scores, axis=-1)
    ctx = jnp.einsum("bhqk,bhkd->bhqd", probs, v).transpose(0, 2, 1, 3).reshape(B, Lq, H * D)
    y = ctx @ params["o_w"] + params["o_b"][0] + hs
    mean = y.mean(-1, keepdims=True)
    var = ((y - mean) ** 2).mean(-1, keepdims=True)
    return (y - mean) / jnp.sqrt(var + LN_EPS) * params["ln_g"][0] + params["ln_b"][0]


if __name__ == "__main__":
    B, Lq, Lkv = 2, 8, 8
    key = jax.random.PRNGKey(0)
    ks = jax.random.split(key, 12)

    params = {
        "q_w": 0.05 * jax.random.normal(ks[0], (Q_DIM, HIDDEN), jnp.float32),
        "q_b": 0.01 * jax.random.normal(ks[1], (1, HIDDEN), jnp.float32),
        "k_w": 0.05 * jax.random.normal(ks[2], (KV_DIM, HIDDEN), jnp.float32),
        "k_b": 0.01 * jax.random.normal(ks[3], (1, HIDDEN), jnp.float32),
        "v_w": 0.05 * jax.random.normal(ks[4], (KV_DIM, HIDDEN), jnp.float32),
        "v_b": 0.01 * jax.random.normal(ks[5], (1, HIDDEN), jnp.float32),
        "o_w": 0.05 * jax.random.normal(ks[6], (HIDDEN, HIDDEN), jnp.float32),
        "o_b": 0.01 * jax.random.normal(ks[7], (1, HIDDEN), jnp.float32),
        "ln_g": jnp.ones((1, HIDDEN), jnp.float32),
        "ln_b": jnp.zeros((1, HIDDEN), jnp.float32),
    }

    hidden_states = jax.random.normal(ks[8], (B, Lq, Q_DIM), jnp.float32)
    injected_hidden_states = jax.random.normal(ks[9], (B, Lkv, KV_DIM), jnp.float32)

    # standard BERT additive mask: (B, 1, 1, Lkv); mask out the last 3 kv tokens of batch 1
    keep = jnp.ones((B, Lkv), jnp.float32).at[1, -3:].set(0.0)
    injected_attention_mask = ((1.0 - keep) * -10000.0).reshape(B, 1, 1, Lkv)

    wpack, out_vecs = pack_params(params)               # one-time packing (2 operands)

    out = inject_cross_attention_forward(
        wpack, out_vecs, hidden_states, injected_hidden_states, injected_attention_mask
    )
    out = jax.block_until_ready(out)

    ref = reference_forward(
        params, hidden_states, injected_hidden_states, injected_attention_mask
    )
    assert out.shape == (B, Lq, HIDDEN)
    # tolerance accounts for bf16 MXU inputs (weights/activations); accumulation is f32
    assert jnp.allclose(out, ref, rtol=2e-2, atol=2e-2), "mismatch vs pure-JAX reference"

    print("KERNEL_OK")
</pallas_src>

<mosaic_0001>
module attributes {stable_mosaic.version = 11 : i64} {
  func.func @_fused_kernel(%arg0: i32, %arg1: memref<8x32xf32, #tpu.memory_space<vmem>>, %arg2: memref<8x16xf32, #tpu.memory_space<vmem>>, %arg3: memref<1x1x8xf32, #tpu.memory_space<vmem>>, %arg4: memref<4x104x8xbf16, #tpu.memory_space<vmem>>, %arg5: memref<3x32xf32, #tpu.memory_space<vmem>>, %arg6: memref<8x32xf32, #tpu.memory_space<vmem>>) attributes {dimension_semantics = [#tpu.dimension_semantics<parallel>], iteration_bounds = array<i64: 2>, scalar_prefetch = 0 : i64, scratch_operands = 0 : i64, tpu.core_type = #tpu.core_type<tc>, window_params = [{transform_indices = @transform_0, window_bounds = array<i64: 8, 32>}, {transform_indices = @transform_1, window_bounds = array<i64: 8, 16>}, {transform_indices = @transform_2, window_bounds = array<i64: 1, 1, 8>}, {pipeline_mode = #tpu.pipeline_mode<synchronous>, transform_indices = @transform_3, window_bounds = array<i64: 4, 104, 8>}, {pipeline_mode = #tpu.pipeline_mode<synchronous>, transform_indices = @transform_4, window_bounds = array<i64: 3, 32>}, {transform_indices = @transform_5, window_bounds = array<i64: 8, 32>}]} {
    %c0 = arith.constant 0 : index
    %c0_0 = arith.constant 0 : index
    %0 = vector.load %arg1[%c0, %c0_0] : memref<8x32xf32, #tpu.memory_space<vmem>>, vector<8x32xf32>
    %1 = arith.truncf %0 : vector<8x32xf32> to vector<8x32xbf16>
    %c0_1 = arith.constant 0 : index
    %c0_2 = arith.constant 0 : index
    %2 = vector.load %arg2[%c0_1, %c0_2] : memref<8x16xf32, #tpu.memory_space<vmem>>, vector<8x16xf32>
    %3 = arith.truncf %2 : vector<8x16xf32> to vector<8x16xbf16>
    %c0_3 = arith.constant 0 : index
    %c0_4 = arith.constant 0 : index
    %c0_5 = arith.constant 0 : index
    %4 = vector.load %arg4[%c0_3, %c0_4, %c0_5] : memref<4x104x8xbf16, #tpu.memory_space<vmem>>, vector<4x32x8xbf16>
    %c0_6 = arith.constant 0 : index
    %c32 = arith.constant 32 : index
    %c0_7 = arith.constant 0 : index
    %5 = vector.load %arg4[%c0_6, %c32, %c0_7] : memref<4x104x8xbf16, #tpu.memory_space<vmem>>, vector<4x16x8xbf16>
    %c0_8 = arith.constant 0 : index
    %c48 = arith.constant 48 : index
    %c0_9 = arith.constant 0 : index
    %6 = vector.load %arg4[%c0_8, %c48, %c0_9] : memref<4x104x8xbf16, #tpu.memory_space<vmem>>, vector<4x16x8xbf16>
    %c0_10 = arith.constant 0 : index
    %c64 = arith.constant 64 : index
    %c0_11 = arith.constant 0 : index
    %7 = vector.load %arg4[%c0_10, %c64, %c0_11] : memref<4x104x8xbf16, #tpu.memory_space<vmem>>, vector<4x32x8xbf16>
    %c0_12 = arith.constant 0 : index
    %c96 = arith.constant 96 : index
    %c0_13 = arith.constant 0 : index
    %8 = vector.load %arg4[%c0_12, %c96, %c0_13] : memref<4x104x8xbf16, #tpu.memory_space<vmem>>, vector<4x1x8xbf16>
    %9 = arith.extf %8 : vector<4x1x8xbf16> to vector<4x1x8xf32>
    %c0_14 = arith.constant 0 : index
    %c97 = arith.constant 97 : index
    %c0_15 = arith.constant 0 : index
    %10 = vector.load %arg4[%c0_14, %c97, %c0_15] : memref<4x104x8xbf16, #tpu.memory_space<vmem>>, vector<4x1x8xbf16>
    %11 = arith.extf %10 : vector<4x1x8xbf16> to vector<4x1x8xf32>
    %c0_16 = arith.constant 0 : index
    %c98 = arith.constant 98 : index
    %c0_17 = arith.constant 0 : index
    %12 = vector.load %arg4[%c0_16, %c98, %c0_17] : memref<4x104x8xbf16, #tpu.memory_space<vmem>>, vector<4x1x8xbf16>
    %13 = arith.extf %12 : vector<4x1x8xbf16> to vector<4x1x8xf32>
    %14 = vector.shape_cast %1 : vector<8x32xbf16> to vector<1x8x32xbf16>
    %15 = vector.shape_cast %14 : vector<1x8x32xbf16> to vector<1x8x32xbf16>
    %16 = vector.broadcast %15 : vector<1x8x32xbf16> to vector<4x8x32xbf16>
    %17 = vector.shape_cast %3 : vector<8x16xbf16> to vector<1x8x16xbf16>
    %18 = vector.shape_cast %17 : vector<1x8x16xbf16> to vector<1x8x16xbf16>
    %19 = vector.broadcast %18 : vector<1x8x16xbf16> to vector<4x8x16xbf16>
    "tpu.trace_start"() <{level = 10 : i32, message = "hqc,hcd->hqd"}> : () -> ()
    %cst = arith.constant dense<0.000000e+00> : vector<4x8x8xf32>
    %20 = tpu.matmul %16, %4, %cst {dimension_numbers = #tpu.dot_dimension_numbers<[2], [1], [1], [2], [0, 0, 0, 1, 1, 2], [0], [0]>} : vector<4x8x32xbf16>, vector<4x32x8xbf16>, vector<4x8x8xf32> -> vector<4x8x8xf32>
    "tpu.trace_stop"() : () -> ()
    %21 = vector.broadcast %9 : vector<4x1x8xf32> to vector<4x8x8xf32>
    %22 = arith.addf %20, %21 : vector<4x8x8xf32>
    "tpu.trace_start"() <{level = 10 : i32, message = "hkc,hcd->hkd"}> : () -> ()
    %cst_18 = arith.constant dense<0.000000e+00> : vector<4x8x8xf32>
    %23 = tpu.matmul %19, %5, %cst_18 {dimension_numbers = #tpu.dot_dimension_numbers<[2], [1], [1], [2], [0, 0, 0, 1, 1, 2], [0], [0]>} : vector<4x8x16xbf16>, vector<4x16x8xbf16>, vector<4x8x8xf32> -> vector<4x8x8xf32>
    "tpu.trace_stop"() : () -> ()
    %24 = vector.broadcast %11 : vector<4x1x8xf32> to vector<4x8x8xf32>
    %25 = arith.addf %23, %24 : vector<4x8x8xf32>
    "tpu.trace_start"() <{level = 10 : i32, message = "hkc,hcd->hkd"}> : () -> ()
    %cst_19 = arith.constant dense<0.000000e+00> : vector<4x8x8xf32>
    %26 = tpu.matmul %19, %6, %cst_19 {dimension_numbers = #tpu.dot_dimension_numbers<[2], [1], [1], [2], [0, 0, 0, 1, 1, 2], [0], [0]>} : vector<4x8x16xbf16>, vector<4x16x8xbf16>, vector<4x8x8xf32> -> vector<4x8x8xf32>
    "tpu.trace_stop"() : () -> ()
    %27 = vector.broadcast %13 : vector<4x1x8xf32> to vector<4x8x8xf32>
    %28 = arith.addf %26, %27 : vector<4x8x8xf32>
    %29 = arith.truncf %22 : vector<4x8x8xf32> to vector<4x8x8xbf16>
    %30 = arith.truncf %25 : vector<4x8x8xf32> to vector<4x8x8xbf16>
    "tpu.trace_start"() <{level = 10 : i32, message = "hqd,hkd->hqk"}> : () -> ()
    %cst_20 = arith.constant dense<0.000000e+00> : vector<4x8x8xf32>
    %31 = tpu.matmul %29, %30, %cst_20 {dimension_numbers = #tpu.dot_dimension_numbers<[2], [2], [1], [1], [0, 0, 0, 1, 1, 1], [0], [0]>} : vector<4x8x8xbf16>, vector<4x8x8xbf16>, vector<4x8x8xf32> -> vector<4x8x8xf32>
    "tpu.trace_stop"() : () -> ()
    %c0_21 = arith.constant 0 : index
    %c0_22 = arith.constant 0 : index
    %c0_23 = arith.constant 0 : index
    %32 = vector.load %arg3[%c0_21, %c0_22, %c0_23] : memref<1x1x8xf32, #tpu.memory_space<vmem>>, vector<1x1x8xf32>
    %33 = vector.shape_cast %32 : vector<1x1x8xf32> to vector<1x8xf32>
    %34 = vector.shape_cast %33 : vector<1x8xf32> to vector<1x1x8xf32>
    %35 = vector.broadcast %34 : vector<1x1x8xf32> to vector<4x8x8xf32>
    %36 = arith.addf %31, %35 : vector<4x8x8xf32>
    %cst_24 = arith.constant dense<0xFF800000> : vector<4x8xf32>
    %37 = vector.multi_reduction <maximumf>, %36, %cst_24 [2] : vector<4x8x8xf32> to vector<4x8xf32>
    %38 = vector.shape_cast %37 : vector<4x8xf32> to vector<4x8x1xf32>
    %39 = vector.broadcast %38 : vector<4x8x1xf32> to vector<4x8x8xf32>
    %40 = arith.subf %36, %39 : vector<4x8x8xf32>
    %41 = math.exp %40 : vector<4x8x8xf32>
    %cst_25 = arith.constant dense<0.000000e+00> : vector<4x8xf32>
    %42 = vector.multi_reduction <add>, %41, %cst_25 [2] : vector<4x8x8xf32> to vector<4x8xf32>
    %43 = vector.shape_cast %42 : vector<4x8xf32> to vector<4x8x1xf32>
    %44 = vector.broadcast %43 : vector<4x8x1xf32> to vector<4x8x8xf32>
    %45 = arith.divf %41, %44 : vector<4x8x8xf32>
    %46 = arith.truncf %45 : vector<4x8x8xf32> to vector<4x8x8xbf16>
    %47 = arith.truncf %28 : vector<4x8x8xf32> to vector<4x8x8xbf16>
    "tpu.trace_start"() <{level = 10 : i32, message = "hqk,hkd->hqd"}> : () -> ()
    %cst_26 = arith.constant dense<0.000000e+00> : vector<4x8x8xf32>
    %48 = tpu.matmul %46, %47, %cst_26 {dimension_numbers = #tpu.dot_dimension_numbers<[2], [1], [1], [2], [0, 0, 0, 1, 1, 2], [0], [0]>} : vector<4x8x8xbf16>, vector<4x8x8xbf16>, vector<4x8x8xf32> -> vector<4x8x8xf32>
    "tpu.trace_stop"() : () -> ()
    %49 = arith.truncf %48 : vector<4x8x8xf32> to vector<4x8x8xbf16>
    "tpu.trace_start"() <{level = 10 : i32, message = "hqd,hod->hqo"}> : () -> ()
    %cst_27 = arith.constant dense<0.000000e+00> : vector<4x8x32xf32>
    %50 = tpu.matmul %49, %7, %cst_27 {dimension_numbers = #tpu.dot_dimension_numbers<[2], [2], [1], [1], [0, 0, 0, 1, 1, 1], [0], [0]>} : vector<4x8x8xbf16>, vector<4x32x8xbf16>, vector<4x8x32xf32> -> vector<4x8x32xf32>
    "tpu.trace_stop"() : () -> ()
    %cst_28 = arith.constant dense<0.000000e+00> : vector<8x32xf32>
    %51 = vector.multi_reduction <add>, %50, %cst_28 [0] : vector<4x8x32xf32> to vector<8x32xf32>
    %c0_29 = arith.constant 0 : index
    %c0_30 = arith.constant 0 : index
    %52 = vector.load %arg5[%c0_29, %c0_30] : memref<3x32xf32, #tpu.memory_space<vmem>>, vector<1x32xf32>
    %53 = vector.broadcast %52 : vector<1x32xf32> to vector<8x32xf32>
    %54 = arith.addf %51, %53 : vector<8x32xf32>
    %55 = arith.addf %54, %0 : vector<8x32xf32>
    %cst_31 = arith.constant dense<0.000000e+00> : vector<8xf32>
    %56 = vector.multi_reduction <add>, %55, %cst_31 [1] : vector<8x32xf32> to vector<8xf32>
    %57 = vector.shape_cast %56 : vector<8xf32> to vector<8x1xf32>
    %cst_32 = arith.constant 3.200000e+01 : f32
    %58 = vector.broadcast %cst_32 : f32 to vector<8x1xf32>
    %59 = arith.divf %57, %58 : vector<8x1xf32>
    %60 = vector.broadcast %59 : vector<8x1xf32> to vector<8x32xf32>
    %61 = arith.subf %55, %60 : vector<8x32xf32>
    %62 = arith.mulf %61, %61 : vector<8x32xf32>
    %cst_33 = arith.constant dense<0.000000e+00> : vector<8xf32>
    %63 = vector.multi_reduction <add>, %62, %cst_33 [1] : vector<8x32xf32> to vector<8xf32>
    %64 = vector.shape_cast %63 : vector<8xf32> to vector<8x1xf32>
    %cst_34 = arith.constant 3.200000e+01 : f32
    %65 = vector.broadcast %cst_34 : f32 to vector<8x1xf32>
    %66 = arith.divf %64, %65 : vector<8x1xf32>
    %67 = vector.broadcast %59 : vector<8x1xf32> to vector<8x32xf32>
    %68 = arith.subf %55, %67 : vector<8x32xf32>
    %cst_35 = arith.constant 9.99999996E-13 : f32
    %69 = vector.broadcast %cst_35 : f32 to vector<8x1xf32>
    %70 = arith.addf %66, %69 : vector<8x1xf32>
    %71 = math.rsqrt %70 : vector<8x1xf32>
    %72 = vector.broadcast %71 : vector<8x1xf32> to vector<8x32xf32>
    %73 = arith.mulf %68, %72 : vector<8x32xf32>
    %c1 = arith.constant 1 : index
    %c0_36 = arith.constant 0 : index
    %74 = vector.load %arg5[%c1, %c0_36] : memref<3x32xf32, #tpu.memory_space<vmem>>, vector<1x32xf32>
    %75 = vector.broadcast %74 : vector<1x32xf32> to vector<8x32xf32>
    %76 = arith.mulf %73, %75 : vector<8x32xf32>
    %c2 = arith.constant 2 : index
    %c0_37 = arith.constant 0 : index
    %77 = vector.load %arg5[%c2, %c0_37] : memref<3x32xf32, #tpu.memory_space<vmem>>, vector<1x32xf32>
    %78 = vector.broadcast %77 : vector<1x32xf32> to vector<8x32xf32>
    %79 = arith.addf %76, %78 : vector<8x32xf32>
    %c0_38 = arith.constant 0 : index
    %c0_39 = arith.constant 0 : index
    %80 = vector.load %arg6[%c0_38, %c0_39] : memref<8x32xf32, #tpu.memory_space<vmem>>, vector<8x32xf32>
    tpu.vector_store %arg6[%c0_38, %c0_39], %79 {strides = array<i32>} : memref<8x32xf32, #tpu.memory_space<vmem>>, vector<8x32xf32>,
    return
  }
  func.func @transform_0(%arg0: i32) -> (i32, i32) {
    %c0_i32 = arith.constant 0 : i32
    %c0_i32_0 = arith.constant 0 : i32
    return %arg0, %c0_i32 : i32, i32
  }
  func.func @transform_1(%arg0: i32) -> (i32, i32) {
    %c0_i32 = arith.constant 0 : i32
    %c0_i32_0 = arith.constant 0 : i32
    return %arg0, %c0_i32 : i32, i32
  }
  func.func @transform_2(%arg0: i32) -> (i32, i32, i32) {
    %c0_i32 = arith.constant 0 : i32
    %c0_i32_0 = arith.constant 0 : i32
    %c0_i32_1 = arith.constant 0 : i32
    return %arg0, %c0_i32, %c0_i32_0 : i32, i32, i32
  }
  func.func @transform_3(%arg0: i32) -> (i32, i32, i32) {
    %c0_i32 = arith.constant 0 : i32
    %c0_i32_0 = arith.constant 0 : i32
    %c0_i32_1 = arith.constant 0 : i32
    %c0_i32_2 = arith.constant 0 : i32
    return %c0_i32, %c0_i32_0, %c0_i32_1 : i32, i32, i32
  }
  func.func @transform_4(%arg0: i32) -> (i32, i32) {
    %c0_i32 = arith.constant 0 : i32
    %c0_i32_0 = arith.constant 0 : i32
    %c0_i32_1 = arith.constant 0 : i32
    return %c0_i32, %c0_i32_0 : i32, i32
  }
  func.func @transform_5(%arg0: i32) -> (i32, i32) {
    %c0_i32 = arith.constant 0 : i32
    %c0_i32_0 = arith.constant 0 : i32
    return %arg0, %c0_i32 : i32, i32
  }
}

</mosaic_0001>

<llo_original>
// kernel: inject_cross_attention_forward.1
$region0: #{inject_cross_attention_forward.1}
  #allocation0 [shape = 'u32[]', space=smem, size = 0x4, offset = 0x4, fixed_abs, tag = 'smem constant byte address 0x4 - core index']
  #allocation1 [shape = 'u32[144,128]{1,0:T(1,128)}', space=vmem, size = 0x12000, scoped, tag = 'internal scratch']
  %s0 = inlined_call_operand.vmem [shape: f32[16,32], index: 0, kind: input, shape index: {}]
  %s1 = inlined_call_operand.vmem [shape: f32[16,16], index: 1, kind: input, shape index: {}]
  %s2 = inlined_call_operand.vmem [shape: f32[2,1,8], index: 2, kind: input, shape index: {}]
  %s3 = inlined_call_operand.vmem [shape: bf16[4,104,8], index: 3, kind: input, shape index: {}]
  %s4 = inlined_call_operand.vmem [shape: f32[3,32], index: 4, kind: input, shape index: {}]
  %s5 = inlined_call_operand.hbm [shape: f32[16,32], index: 5, kind: output, shape index: {}]
  %s6 = sld [smem:[#allocation0]]
  $region53: #{inject_cross_attention_forward.1} parent=0
    _
  %s8 = ssub.s32 1, %s6
  %s9 = scalar_select 0, %s8, %s6
  $region1: #{inject_cross_attention_forward.1} parent=0
    #allocation2 [shape = 'u8[8192]{0}', space=vmem, size = 0x2000, scoped, tag = 'output window, operand 0']
    #allocation3 [shape = 's32[2]{0}', space=sflag, size = 0x8, scoped, tag = 'scoped memory for inject_cross_attention_forward.1']
    %10 = vsyncpa [#allocation3], 0
    %s11 = scalar_lea.sflag [#allocation3], 1
    %12 = vsyncpa %s11, 0
    loop: start=0, step=1, limit=4
    $region2: #{inject_cross_attention_forward.1} parent=1 // loop_pre_header
      _
    $region3: #{inject_cross_attention_forward.1} parent=1 // loop_header
      %s14 = sphi 0, %s18
      %p15 = scmp.ge.s32.totalorder %s14, 4
      %s24 = sphi 0, %s26
      %s27 = sphi 0, %s24
      %s28 = sphi 0, %s27
      %s44 = sphi 0, %s28
      %s50 = sphi 0, %s52
      %s53 = sphi 0, %s50
      %s54 = sphi 0, %s53
      %s70 = sphi 0, %s54
      %s76 = sphi 0, %s78
      %s79 = sphi 0, %s76
      %s80 = sphi 0, %s79
      %s96 = sphi 0, %s80
      %s100 = sphi 0, %s100
      %s102 = sphi 0, %s100
      %s103 = sphi 0, %s102
      %s117 = sphi 0, %s103
      %s121 = sphi 0, %s121
      %s123 = sphi 0, %s121
      %s124 = sphi 0, %s123
      %s138 = sphi 0, %s124
      %s144 = sphi 0, %s146
      %s147 = sphi 0, %s144
      %s148 = sphi 0, %s147
      %s164 = sphi 0, %s148
    $region4: #{inject_cross_attention_forward.1} parent=1 // loop_header_branch
      %17 = sbr.rel (%p15) target = $region8
    $region5: #{inject_cross_attention_forward.1} parent=1 // loop_body
      %s19 = ssub.s32 %s14, 1
      %s20 = ssub.s32 %s14, 2
      %s21 = sadd.s32 %s14, 1
      %s22 = ssub.s32 %s14, %s21
      %p23 = scmp.eq.s32.totalorder %s22, 0
      %s25 = sadd.s32 %s24, 1
      %s26 = scalar_select %p23, %s24, %s25
      %p29 = pneg %p23
      %p30 = scmp.eq.s32.totalorder %s14, 1
      %p31 = por %p29, %p30
      %p32 = scmp.ne.s32.totalorder %s24, %s27
      %p33 = scmp.eq.s32.totalorder %s14, 0
      %p34 = por %p32, %p33
      %p35 = scmp.ne.s32.totalorder %s24, %s27
      %p36 = scmp.eq.s32.totalorder %s19, 1
      %p37 = por %p35, %p36
      %p38 = scmp.ne.s32.totalorder %s27, %s28
      %p39 = scmp.eq.s32.totalorder %s19, 0
      %p40 = por %p38, %p39
      %p41 = scmp.ne.s32.totalorder %s27, %s28
      %p42 = scmp.eq.s32.totalorder %s20, 1
      %p43 = por %p41, %p42
      %p45 = scmp.ne.s32.totalorder %s28, %s44
      %p46 = scmp.eq.s32.totalorder %s20, 0
      %p47 = por %p45, %p46
      %s48 = ssub.s32 %s14, %s21
      %p49 = scmp.eq.s32.totalorder %s48, 0
      %s51 = sadd.s32 %s50, 1
      %s52 = scalar_select %p49, %s50, %s51
      %p55 = pneg %p49
      %p56 = scmp.eq.s32.totalorder %s14, 1
      %p57 = por %p55, %p56
      %p58 = scmp.ne.s32.totalorder %s50, %s53
      %p59 = scmp.eq.s32.totalorder %s14, 0
      %p60 = por %p58, %p59
      %p61 = scmp.ne.s32.totalorder %s50, %s53
      %p62 = scmp.eq.s32.totalorder %s19, 1
      %p63 = por %p61, %p62
      %p64 = scmp.ne.s32.totalorder %s53, %s54
      %p65 = scmp.eq.s32.totalorder %s19, 0
      %p66 = por %p64, %p65
      %p67 = scmp.ne.s32.totalorder %s53, %s54
      %p68 = scmp.eq.s32.totalorder %s20, 1
      %p69 = por %p67, %p68
      %p71 = scmp.ne.s32.totalorder %s54, %s70
      %p72 = scmp.eq.s32.totalorder %s20, 0
      %p73 = por %p71, %p72
      %s74 = ssub.s32 %s14, %s21
      %p75 = scmp.eq.s32.totalorder %s74, 0
      %s77 = sadd.s32 %s76, 1
      %s78 = scalar_select %p75, %s76, %s77
      %p81 = pneg %p75
      %p82 = scmp.eq.s32.totalorder %s14, 1
      %p83 = por %p81, %p82
      %p84 = scmp.ne.s32.totalorder %s76, %s79
      %p85 = scmp.eq.s32.totalorder %s14, 0
      %p86 = por %p84, %p85
      %p87 = scmp.ne.s32.totalorder %s76, %s79
      %p88 = scmp.eq.s32.totalorder %s19, 1
      %p89 = por %p87, %p88
      %p90 = scmp.ne.s32.totalorder %s79, %s80
      %p91 = scmp.eq.s32.totalorder %s19, 0
      %p92 = por %p90, %p91
      %p93 = scmp.ne.s32.totalorder %s79, %s80
      %p94 = scmp.eq.s32.totalorder %s20, 1
      %p95 = por %p93, %p94
      %p97 = scmp.ne.s32.totalorder %s80, %s96
      %p98 = scmp.eq.s32.totalorder %s20, 0
      %p99 = por %p97, %p98
      %s101 = sadd.s32 %s100, 1
      %p104 = scmp.eq.s32.totalorder %s14, 1
      %p105 = scmp.ne.s32.totalorder %s100, %s102
      %p106 = scmp.eq.s32.totalorder %s14, 0
      %p107 = por %p105, %p106
      %p108 = scmp.ne.s32.totalorder %s100, %s102
      %p109 = scmp.eq.s32.totalorder %s19, 1
      %p110 = por %p108, %p109
      %p111 = scmp.ne.s32.totalorder %s102, %s103
      %p112 = scmp.eq.s32.totalorder %s19, 0
      %p113 = por %p111, %p112
      %p114 = scmp.ne.s32.totalorder %s102, %s103
      %p115 = scmp.eq.s32.totalorder %s20, 1
      %p116 = por %p114, %p115
      %p118 = scmp.ne.s32.totalorder %s103, %s117
      %p119 = scmp.eq.s32.totalorder %s20, 0
      %p120 = por %p118, %p119
      %s122 = sadd.s32 %s121, 1
      %p125 = scmp.eq.s32.totalorder %s14, 1
      %p126 = scmp.ne.s32.totalorder %s121, %s123
      %p127 = scmp.eq.s32.totalorder %s14, 0
      %p128 = por %p126, %p127
      %p129 = scmp.ne.s32.totalorder %s121, %s123
      %p130 = scmp.eq.s32.totalorder %s19, 1
      %p131 = por %p129, %p130
      %p132 = scmp.ne.s32.totalorder %s123, %s124
      %p133 = scmp.eq.s32.totalorder %s19, 0
      %p134 = por %p132, %p133
      %p135 = scmp.ne.s32.totalorder %s123, %s124
      %p136 = scmp.eq.s32.totalorder %s20, 1
      %p137 = por %p135, %p136
      %p139 = scmp.ne.s32.totalorder %s124, %s138
      %p140 = scmp.eq.s32.totalorder %s20, 0
      %p141 = por %p139, %p140
      %s142 = ssub.s32 %s14, %s21
      %p143 = scmp.eq.s32.totalorder %s142, 0
      %s145 = sadd.s32 %s144, 1
      %s146 = scalar_select %p143, %s144, %s145
      %p149 = pneg %p143
      %p150 = scmp.eq.s32.totalorder %s14, 1
      %p151 = por %p149, %p150
      %p152 = scmp.ne.s32.totalorder %s144, %s147
      %p153 = scmp.eq.s32.totalorder %s14, 0
      %p154 = por %p152, %p153
      %p155 = scmp.ne.s32.totalorder %s144, %s147
      %p156 = scmp.eq.s32.totalorder %s19, 1
      %p157 = por %p155, %p156
      %p158 = scmp.ne.s32.totalorder %s147, %s148
      %p159 = scmp.eq.s32.totalorder %s19, 0
      %p160 = por %p158, %p159
      %p161 = scmp.ne.s32.totalorder %s147, %s148
      %p162 = scmp.eq.s32.totalorder %s20, 1
      %p163 = por %p161, %p162
      %p165 = scmp.ne.s32.totalorder %s148, %s164
      %p166 = scmp.eq.s32.totalorder %s20, 0
      %p167 = por %p165, %p166
      %p168 = scmp.le.s32.totalorder 1, %s14
      %p169 = scmp.lt.s32.totalorder %s14, 3
      %p170 = pnand %p168, %p169
      %p171 = pneg %p170
      // Predicated region
      $region9: #{inject_cross_attention_forward.1} parent=5 // pred_check
        _
      $region10: #{inject_cross_attention_forward.1} parent=5 // pred_check_branch
        %173 = sbr.rel (%p170) target = $region12
      $region11: #{inject_cross_attention_forward.1} parent=5 // pred_region
        %s174 = ssub.s32 %s14, 1
        // Predicated region
        $region13: #{inject_cross_attention_forward.1} parent=11 // pred_check
          %p175 = pneg %p113
        $region14: #{inject_cross_attention_forward.1} parent=11 // pred_check_branch
          %177 = sbr.rel (%p175) target = $region16
        $region15: #{inject_cross_attention_forward.1} parent=11 // pred_region
          _
        $region16: #{inject_cross_attention_forward.1} parent=11 // pred_fallthru
          _
        // Predicated region
        $region17: #{inject_cross_attention_forward.1} parent=11 // pred_check
          %p178 = pneg %p134
        $region18: #{inject_cross_attention_forward.1} parent=11 // pred_check_branch
          %180 = sbr.rel (%p178) target = $region20
        $region19: #{inject_cross_attention_forward.1} parent=11 // pred_region
          _
        $region20: #{inject_cross_attention_forward.1} parent=11 // pred_fallthru
          _
      $region12: #{inject_cross_attention_forward.1} parent=5 // pred_fallthru
        _
      %p181 = scmp.lt.s32.totalorder %s14, 2
      // Predicated region
      $region21: #{inject_cross_attention_forward.1} parent=5 // pred_check
        %p182 = pneg %p181
      $region22: #{inject_cross_attention_forward.1} parent=5 // pred_check_branch
        %184 = sbr.rel (%p182) target = $region24
      $region23: #{inject_cross_attention_forward.1} parent=5 // pred_region
        // Predicated region
        $region25: #{inject_cross_attention_forward.1} parent=23 // pred_check
          %p185 = pneg %p34
        $region26: #{inject_cross_attention_forward.1} parent=23 // pred_check_branch
          %187 = sbr.rel (%p185) target = $region28
        $region27: #{inject_cross_attention_forward.1} parent=23 // pred_region
          %p188 = scmp.lt.s32.totalorder %s14, 1
          %s189 = scalar_select %p188, %s14, 1
          %s190 = smul.addr %s189, 8
          %s191 = scalar_lea.vmem %s0, %s190
        $region28: #{inject_cross_attention_forward.1} parent=23 // pred_fallthru
          _
        // Predicated region
        $region29: #{inject_cross_attention_forward.1} parent=23 // pred_check
          %p192 = pneg %p60
        $region30: #{inject_cross_attention_forward.1} parent=23 // pred_check_branch
          %194 = sbr.rel (%p192) target = $region32
        $region31: #{inject_cross_attention_forward.1} parent=23 // pred_region
          %p195 = scmp.lt.s32.totalorder %s14, 1
          %s196 = scalar_select %p195, %s14, 1
          %s197 = smul.addr %s196, 8
          %s198 = scalar_lea.vmem %s1, %s197
        $region32: #{inject_cross_attention_forward.1} parent=23 // pred_fallthru
          _
        // Predicated region
        $region33: #{inject_cross_attention_forward.1} parent=23 // pred_check
          %p199 = pneg %p86
        $region34: #{inject_cross_attention_forward.1} parent=23 // pred_check_branch
          %201 = sbr.rel (%p199) target = $region36
        $region35: #{inject_cross_attention_forward.1} parent=23 // pred_region
          %p202 = scmp.lt.s32.totalorder %s14, 1
          %s203 = scalar_select %p202, %s14, 1
          %s204 = scalar_lea.vmem %s2, %s203
        $region36: #{inject_cross_attention_forward.1} parent=23 // pred_fallthru
          _
      $region24: #{inject_cross_attention_forward.1} parent=5 // pred_fallthru
        _
      %p205 = scmp.le.s32.totalorder 1, %s14
      %p206 = scmp.lt.s32.totalorder %s14, 3
      %p207 = pnand %p205, %p206
      %p208 = pneg %p207
      // Predicated region
      $region37: #{inject_cross_attention_forward.1} parent=5 // pred_check
        _
      $region38: #{inject_cross_attention_forward.1} parent=5 // pred_check_branch
        %210 = sbr.rel (%p207) target = $region40
      $region39: #{inject_cross_attention_forward.1} parent=5 // pred_region
        %s211 = ssub.s32 %s14, 1
        %p212 = scmp.lt.s32.totalorder %s19, 1
        %s213 = scalar_select %p212, %s19, 1
        %s214 = smul.addr %s213, 8
        %s215 = scalar_lea.vmem %s0, %s214
        %p216 = pneg %p40
        %p217 = pneg %p37
        %p218 = scmp.lt.s32.totalorder %s19, 1
        %s219 = scalar_select %p218, %s19, 1
        %s220 = smul.addr %s219, 8
        %s221 = scalar_lea.vmem %s1, %s220
        %p222 = pneg %p66
        %p223 = pneg %p63
        %p224 = scmp.lt.s32.totalorder %s19, 1
        %s225 = scalar_select %p224, %s19, 1
        %s226 = scalar_lea.vmem %s2, %s225
        %p227 = pneg %p92
        %p228 = pneg %p89
        %p229 = pneg %p113
        %p230 = pneg %p110
        %p231 = pneg %p134
        %p232 = pneg %p131
        %p233 = pneg %p160
        %p234 = pneg %p157
        %s235 = sand.u32 %s147, 1
        %s236 = scalar_lea.sflag [#allocation3], %s235
        %s237 = sand.u32 %s147, 1
        %s238 = smul.addr %s237, 8
        %s239 = scalar_lea.vmem [#allocation2], %s238
        %p240 = scmp.lt.s32.totalorder %s19, 1
        %s241 = scalar_select %p240, %s19, 1
        %s242 = smul.addr %s241, 8
        %s243 = scalar_lea.vmem %s0, %s242
        %p244 = scmp.lt.s32.totalorder %s19, 1
        %s245 = scalar_select %p244, %s19, 1
        %s246 = smul.addr %s245, 8
        %s247 = scalar_lea.vmem %s1, %s246
        %p248 = scmp.lt.s32.totalorder %s19, 1
        %s249 = scalar_select %p248, %s19, 1
        %s250 = scalar_lea.vmem %s2, %s249
        %v252 = vld [vmem:[%s243] sm:$0xff]
        %v253 = vpack.c.bf16 %v252, %v252
        %v254 = vld [vmem:[%s247] sm:$0xff]
        %v255 = vpack.c.bf16 %v254, %v254
        %v256 = vld [vmem:[%s3] sm:$0xf]
        %v257 = vld [vmem:[%s3 + $0x4] sm:$0xf]
        %v258 = vld [vmem:[%s3 + $0x8] sm:$0xf]
        %v259 = vld [vmem:[%s3 + $0xc] sm:$0xf]
        %v260 = vld [vmem:[%s3 + $0x34] sm:$0xf]
        %v261 = vld [vmem:[%s3 + $0x38] sm:$0xf]
        %v262 = vld [vmem:[%s3 + $0x3c] sm:$0xf]
        %v263 = vld [vmem:[%s3 + $0x40] sm:$0xf]
        %v264 = vld [vmem:[%s3 + $0x68] sm:$0xf]
        %v265 = vld [vmem:[%s3 + $0x6c] sm:$0xf]
        %v266 = vld [vmem:[%s3 + $0x70] sm:$0xf]
        %v267 = vld [vmem:[%s3 + $0x74] sm:$0xf]
        %v268 = vld [vmem:[%s3 + $0x9c] sm:$0xf]
        %v269 = vld [vmem:[%s3 + $0xa0] sm:$0xf]
        %v270 = vld [vmem:[%s3 + $0xa4] sm:$0xf]
        %v271 = vld [vmem:[%s3 + $0xa8] sm:$0xf]
        %v272 = vld [vmem:[%s3 + $0x10] sm:$0xf]
        %v273 = vld [vmem:[%s3 + $0x14] sm:$0xf]
        %v274 = vld [vmem:[%s3 + $0x44] sm:$0xf]
        %v275 = vld [vmem:[%s3 + $0x48] sm:$0xf]
        %v276 = vld [vmem:[%s3 + $0x78] sm:$0xf]
        %v277 = vld [vmem:[%s3 + $0x7c] sm:$0xf]
        %v278 = vld [vmem:[%s3 + $0xac] sm:$0xf]
        %v279 = vld [vmem:[%s3 + $0xb0] sm:$0xf]
        %v280 = vld [vmem:[%s3 + $0x18] sm:$0xf]
        %v281 = vld [vmem:[%s3 + $0x1c] sm:$0xf]
        %v282 = vld [vmem:[%s3 + $0x4c] sm:$0xf]
        %v283 = vld [vmem:[%s3 + $0x50] sm:$0xf]
        %v284 = vld [vmem:[%s3 + $0x80] sm:$0xf]
        %v285 = vld [vmem:[%s3 + $0x84] sm:$0xf]
        %v286 = vld [vmem:[%s3 + $0xb4] sm:$0xf]
        %v287 = vld [vmem:[%s3 + $0xb8] sm:$0xf]
        %v288 = vld [vmem:[%s3 + $0x20] sm:$0xf]
        %v289 = vld [vmem:[%s3 + $0x24] sm:$0xf]
        %v290 = vld [vmem:[%s3 + $0x28] sm:$0xf]
        %v291 = vld [vmem:[%s3 + $0x2c] sm:$0xf]
        %v292 = vld [vmem:[%s3 + $0x54] sm:$0xf]
        %v293 = vld [vmem:[%s3 + $0x58] sm:$0xf]
        %v294 = vld [vmem:[%s3 + $0x5c] sm:$0xf]
        %v295 = vld [vmem:[%s3 + $0x60] sm:$0xf]
        %v296 = vld [vmem:[%s3 + $0x88] sm:$0xf]
        %v297 = vld [vmem:[%s3 + $0x8c] sm:$0xf]
        %v298 = vld [vmem:[%s3 + $0x90] sm:$0xf]
        %v299 = vld [vmem:[%s3 + $0x94] sm:$0xf]
        %v300 = vld [vmem:[%s3 + $0xbc] sm:$0xf]
        %v301 = vld [vmem:[%s3 + $0xc0] sm:$0xf]
        %v302 = vld [vmem:[%s3 + $0xc4] sm:$0xf]
        %v303 = vld [vmem:[%s3 + $0xc8] sm:$0xf]
        %v304 = vld [vmem:[%s3 + $0x30] sm:$0x1]
        %v305 = vld [vmem:[%s3 + $0x64] sm:$0x1]
        %v306 = vld [vmem:[%s3 + $0x98] sm:$0x1]
        %v307 = vld [vmem:[%s3 + $0xcc] sm:$0x1]
        %v308 = vunpack.c.l.bf16 %v304
        %v309 = vunpack.c.l.bf16 %v305
        %v310 = vunpack.c.l.bf16 %v306
        %v311 = vunpack.c.l.bf16 %v307
        %v312 = vld [vmem:[%s3 + $0x30] sm:$0x2]
        %v313 = vld [vmem:[%s3 + $0x64] sm:$0x2]
        %v314 = vld [vmem:[%s3 + $0x98] sm:$0x2]
        %v315 = vld [vmem:[%s3 + $0xcc] sm:$0x2]
        %v316 = vunpack.c.l.bf16 %v312
        %v317 = vunpack.c.l.bf16 %v313
        %v318 = vunpack.c.l.bf16 %v314
        %v319 = vunpack.c.l.bf16 %v315
        %v320 = vlaneseq
        %v321 = vshrl.u32 %v320, 7
        %v322 = vsub.s32 0, %v321
        %v323 = vrot.slane %v308, %v322
        %v324 = vlaneseq
        %v325 = vshrl.u32 %v324, 7
        %v326 = vsub.s32 0, %v325
        %v327 = vrot.slane %v309, %v326
        %v328 = vlaneseq
        %v329 = vshrl.u32 %v328, 7
        %v330 = vsub.s32 0, %v329
        %v331 = vrot.slane %v310, %v330
        %v332 = vlaneseq
        %v333 = vshrl.u32 %v332, 7
        %v334 = vsub.s32 0, %v333
        %v335 = vrot.slane %v311, %v334
        %v340 = vunpack.c.l.b16 %v256
        %v341 = vunpack.c.l.b16 %v257
        %v342 = vunpack.c.l.b16 %v258
        %v343 = vunpack.c.l.b16 %v259
        %v344 = vpack.c.b16 %v341, %v340
        %v345 = vpack.c.b16 %v343, %v342
        %vm348 = vcmask 261120
        %v350 = vsel %vm348, %v253, 0
        %352 = vmatprep.subr.bf16.mxu0 0
        %353 = vmatpush1.bf16.msra.mxu0 %v344
        %354 = vmatprep.subr.bf16.mxu0 0
        %355 = vmatpush1.bf16.msra.mxu0 %v345
        %356 = vmatprep.subr.bf16.mxu0 0
        %357 = vmatpush1.bf16.msra.mxu0 0
        %358 = vmatprep.subr.bf16.mxu0 0
        %359 = vmatpush1.bf16.msra.mxu0 0
        %360 = vmatprep.subr.bf16.mxu0 0
        %361 = vmatpush1.bf16.msra.mxu0 0
        %362 = vmatprep.subr.bf16.mxu0 0
        %363 = vmatpush1.bf16.msra.mxu0 0
        %364 = vmatprep.subr.bf16.mxu0 0
        %365 = vmatpush1.bf16.msra.mxu0 0
        %366 = vmatprep.subr.bf16.mxu0 0
        %367 = vmatpush1.bf16.msra.mxu0 0
        %368 = vmatprep.subr.bf16.mxu0 0
        %369 = vmatpush1.bf16.msra.mxu0 0
        %370 = vmatprep.subr.bf16.mxu0 0
        %371 = vmatpush1.bf16.msra.mxu0 0
        %372 = vmatprep.subr.bf16.mxu0 0
        %373 = vmatpush1.bf16.msra.mxu0 0
        %374 = vmatprep.subr.bf16.mxu0 0
        %375 = vmatpush1.bf16.msra.mxu0 0
        %376 = vmatprep.subr.bf16.mxu0 0
        %377 = vmatpush1.bf16.msra.mxu0 0
        %378 = vmatprep.subr.bf16.mxu0 0
        %379 = vmatpush1.bf16.msra.mxu0 0
        %380 = vmatprep.subr.bf16.mxu0 0
        %381 = vmatpush1.bf16.msra.mxu0 0
        %382 = vmatprep.subr.bf16.mxu0 0
        %383 = vmatpush1.bf16.msra.mxu0 0
        %384 = vmatprep.mubr.bf16.mxu0 0
        %385 = vmatmul.mubr.bf16.gmra.mrb[0].mxu0 %v350
        %v386 = vpop.f32.mrb[0].mxu0
        %v387 = vadd.f32 %v323, %v386
        %v388 = vpop.f32.mrb[0].mxu0
        %v389 = vpop.f32.mrb[0].mxu0
        %v390 = vpop.f32.mrb[0].mxu0
        %391 = vdwg.mxu0
        %v396 = vunpack.c.l.b16 %v260
        %v397 = vunpack.c.l.b16 %v261
        %v398 = vunpack.c.l.b16 %v262
        %v399 = vunpack.c.l.b16 %v263
        %v400 = vpack.c.b16 %v397, %v396
        %v401 = vpack.c.b16 %v399, %v398
        %404 = vmatprep.subr.bf16.mxu0 0
        %405 = vmatpush1.bf16.msra.mxu0 %v400
        %406 = vmatprep.subr.bf16.mxu0 0
        %407 = vmatpush1.bf16.msra.mxu0 %v401
        %408 = vmatprep.subr.bf16.mxu0 0
        %409 = vmatpush1.bf16.msra.mxu0 0
        %410 = vmatprep.subr.bf16.mxu0 0
        %411 = vmatpush1.bf16.msra.mxu0 0
        %412 = vmatprep.subr.bf16.mxu0 0
        %413 = vmatpush1.bf16.msra.mxu0 0
        %414 = vmatprep.subr.bf16.mxu0 0
        %415 = vmatpush1.bf16.msra.mxu0 0
        %416 = vmatprep.subr.bf16.mxu0 0
        %417 = vmatpush1.bf16.msra.mxu0 0
        %418 = vmatprep.subr.bf16.mxu0 0
        %419 = vmatpush1.bf16.msra.mxu0 0
        %420 = vmatprep.subr.bf16.mxu0 0
        %421 = vmatpush1.bf16.msra.mxu0 0
        %422 = vmatprep.subr.bf16.mxu0 0
        %423 = vmatpush1.bf16.msra.mxu0 0
        %424 = vmatprep.subr.bf16.mxu0 0
        %425 = vmatpush1.bf16.msra.mxu0 0
        %426 = vmatprep.subr.bf16.mxu0 0
        %427 = vmatpush1.bf16.msra.mxu0 0
        %428 = vmatprep.subr.bf16.mxu0 0
        %429 = vmatpush1.bf16.msra.mxu0 0
        %430 = vmatprep.subr.bf16.mxu0 0
        %431 = vmatpush1.bf16.msra.mxu0 0
        %432 = vmatprep.subr.bf16.mxu0 0
        %433 = vmatpush1.bf16.msra.mxu0 0
        %434 = vmatprep.subr.bf16.mxu0 0
        %435 = vmatpush1.bf16.msra.mxu0 0
        %436 = vmatprep.mubr.bf16.mxu0 0
        %437 = vmatmul.mubr.bf16.gmra.mrb[0].mxu0 %v350
        %v438 = vpop.f32.mrb[0].mxu0
        %v439 = vadd.f32 %v327, %v438
        %v440 = vpop.f32.mrb[0].mxu0
        %v441 = vpop.f32.mrb[0].mxu0
        %v442 = vpop.f32.mrb[0].mxu0
        %443 = vdwg.mxu0
        %v448 = vunpack.c.l.b16 %v264
        %v449 = vunpack.c.l.b16 %v265
        %v450 = vunpack.c.l.b16 %v266
        %v451 = vunpack.c.l.b16 %v267
        %v452 = vpack.c.b16 %v449, %v448
        %v453 = vpack.c.b16 %v451, %v450
        %456 = vmatprep.subr.bf16.mxu0 0
        %457 = vmatpush1.bf16.msra.mxu0 %v452
        %458 = vmatprep.subr.bf16.mxu0 0
        %459 = vmatpush1.bf16.msra.mxu0 %v453
        %460 = vmatprep.subr.bf16.mxu0 0
        %461 = vmatpush1.bf16.msra.mxu0 0
        %462 = vmatprep.subr.bf16.mxu0 0
        %463 = vmatpush1.bf16.msra.mxu0 0
        %464 = vmatprep.subr.bf16.mxu0 0
        %465 = vmatpush1.bf16.msra.mxu0 0
        %466 = vmatprep.subr.bf16.mxu0 0
        %467 = vmatpush1.bf16.msra.mxu0 0
        %468 = vmatprep.subr.bf16.mxu0 0
        %469 = vmatpush1.bf16.msra.mxu0 0
        %470 = vmatprep.subr.bf16.mxu0 0
        %471 = vmatpush1.bf16.msra.mxu0 0
        %472 = vmatprep.subr.bf16.mxu0 0
        %473 = vmatpush1.bf16.msra.mxu0 0
        %474 = vmatprep.subr.bf16.mxu0 0
        %475 = vmatpush1.bf16.msra.mxu0 0
        %476 = vmatprep.subr.bf16.mxu0 0
        %477 = vmatpush1.bf16.msra.mxu0 0
        %478 = vmatprep.subr.bf16.mxu0 0
        %479 = vmatpush1.bf16.msra.mxu0 0
        %480 = vmatprep.subr.bf16.mxu0 0
        %481 = vmatpush1.bf16.msra.mxu0 0
        %482 = vmatprep.subr.bf16.mxu0 0
        %483 = vmatpush1.bf16.msra.mxu0 0
        %484 = vmatprep.subr.bf16.mxu0 0
        %485 = vmatpush1.bf16.msra.mxu0 0
        %486 = vmatprep.subr.bf16.mxu0 0
        %487 = vmatpush1.bf16.msra.mxu0 0
        %488 = vmatprep.mubr.bf16.mxu0 0
        %489 = vmatmul.mubr.bf16.gmra.mrb[0].mxu0 %v350
        %v490 = vpop.f32.mrb[0].mxu0
        %v491 = vadd.f32 %v331, %v490
        %v492 = vpop.f32.mrb[0].mxu0
        %v493 = vpop.f32.mrb[0].mxu0
        %v494 = vpop.f32.mrb[0].mxu0
        %495 = vdwg.mxu0
        %v500 = vunpack.c.l.b16 %v268
        %v501 = vunpack.c.l.b16 %v269
        %v502 = vunpack.c.l.b16 %v270
        %v503 = vunpack.c.l.b16 %v271
        %v504 = vpack.c.b16 %v501, %v500
        %v505 = vpack.c.b16 %v503, %v502
        %508 = vmatprep.subr.bf16.mxu0 0
        %509 = vmatpush1.bf16.msra.mxu0 %v504
        %510 = vmatprep.subr.bf16.mxu0 0
        %511 = vmatpush1.bf16.msra.mxu0 %v505
        %512 = vmatprep.subr.bf16.mxu0 0
        %513 = vmatpush1.bf16.msra.mxu0 0
        %514 = vmatprep.subr.bf16.mxu0 0
        %515 = vmatpush1.bf16.msra.mxu0 0
        %516 = vmatprep.subr.bf16.mxu0 0
        %517 = vmatpush1.bf16.msra.mxu0 0
        %518 = vmatprep.subr.bf16.mxu0 0
        %519 = vmatpush1.bf16.msra.mxu0 0
        %520 = vmatprep.subr.bf16.mxu0 0
        %521 = vmatpush1.bf16.msra.mxu0 0
        %522 = vmatprep.subr.bf16.mxu0 0
        %523 = vmatpush1.bf16.msra.mxu0 0
        %524 = vmatprep.subr.bf16.mxu0 0
        %525 = vmatpush1.bf16.msra.mxu0 0
        %526 = vmatprep.subr.bf16.mxu0 0
        %527 = vmatpush1.bf16.msra.mxu0 0
        %528 = vmatprep.subr.bf16.mxu0 0
        %529 = vmatpush1.bf16.msra.mxu0 0
        %530 = vmatprep.subr.bf16.mxu0 0
        %531 = vmatpush1.bf16.msra.mxu0 0
        %532 = vmatprep.subr.bf16.mxu0 0
        %533 = vmatpush1.bf16.msra.mxu0 0
        %534 = vmatprep.subr.bf16.mxu0 0
        %535 = vmatpush1.bf16.msra.mxu0 0
        %536 = vmatprep.subr.bf16.mxu0 0
        %537 = vmatpush1.bf16.msra.mxu0 0
        %538 = vmatprep.subr.bf16.mxu0 0
        %539 = vmatpush1.bf16.msra.mxu0 0
        %540 = vmatprep.mubr.bf16.mxu0 0
        %541 = vmatmul.mubr.bf16.gmra.mrb[0].mxu0 %v350
        %v542 = vpop.f32.mrb[0].mxu0
        %v543 = vadd.f32 %v335, %v542
        %v544 = vpop.f32.mrb[0].mxu0
        %v545 = vpop.f32.mrb[0].mxu0
        %v546 = vpop.f32.mrb[0].mxu0
        %547 = vdwg.mxu0
        %v548 = vlaneseq
        %v549 = vshrl.u32 %v548, 7
        %v550 = vsub.s32 1, %v549
        %v551 = vrot.slane %v308, %v550
        %v552 = vlaneseq
        %v553 = vshrl.u32 %v552, 7
        %v554 = vsub.s32 1, %v553
        %v555 = vrot.slane %v309, %v554
        %v556 = vlaneseq
        %v557 = vshrl.u32 %v556, 7
        %v558 = vsub.s32 1, %v557
        %v559 = vrot.slane %v310, %v558
        %v560 = vlaneseq
        %v561 = vshrl.u32 %v560, 7
        %v562 = vsub.s32 1, %v561
        %v563 = vrot.slane %v311, %v562
        %v566 = vunpack.c.l.b16 %v272
        %v567 = vunpack.c.l.b16 %v273
        %v568 = vpack.c.b16 %v567, %v566
        %vm570 = vcmask 130048
        %v572 = vsel %vm570, %v255, 0
        %574 = vmatprep.subr.bf16.mxu0 0
        %575 = vmatpush1.bf16.msra.mxu0 %v568
        %576 = vmatprep.subr.bf16.mxu0 0
        %577 = vmatpush1.bf16.msra.mxu0 0
        %578 = vmatprep.subr.bf16.mxu0 0
        %579 = vmatpush1.bf16.msra.mxu0 0
        %580 = vmatprep.subr.bf16.mxu0 0
        %581 = vmatpush1.bf16.msra.mxu0 0
        %582 = vmatprep.subr.bf16.mxu0 0
        %583 = vmatpush1.bf16.msra.mxu0 0
        %584 = vmatprep.subr.bf16.mxu0 0
        %585 = vmatpush1.bf16.msra.mxu0 0
        %586 = vmatprep.subr.bf16.mxu0 0
        %587 = vmatpush1.bf16.msra.mxu0 0
        %588 = vmatprep.subr.bf16.mxu0 0
        %589 = vmatpush1.bf16.msra.mxu0 0
        %590 = vmatprep.subr.bf16.mxu0 0
        %591 = vmatpush1.bf16.msra.mxu0 0
        %592 = vmatprep.subr.bf16.mxu0 0
        %593 = vmatpush1.bf16.msra.mxu0 0
        %594 = vmatprep.subr.bf16.mxu0 0
        %595 = vmatpush1.bf16.msra.mxu0 0
        %596 = vmatprep.subr.bf16.mxu0 0
        %597 = vmatpush1.bf16.msra.mxu0 0
        %598 = vmatprep.subr.bf16.mxu0 0
        %599 = vmatpush1.bf16.msra.mxu0 0
        %600 = vmatprep.subr.bf16.mxu0 0
        %601 = vmatpush1.bf16.msra.mxu0 0
        %602 = vmatprep.subr.bf16.mxu0 0
        %603 = vmatpush1.bf16.msra.mxu0 0
        %604 = vmatprep.subr.bf16.mxu0 0
        %605 = vmatpush1.bf16.msra.mxu0 0
        %606 = vmatprep.mubr.bf16.mxu0 0
        %607 = vmatmul.mubr.bf16.gmra.mrb[0].mxu0 %v572
        %v608 = vpop.f32.mrb[0].mxu0
        %v609 = vadd.f32 %v551, %v608
        %v610 = vpop.f32.mrb[0].mxu0
        %v611 = vpop.f32.mrb[0].mxu0
        %v612 = vpop.f32.mrb[0].mxu0
        %613 = vdwg.mxu0
        %v616 = vunpack.c.l.b16 %v274
        %v617 = vunpack.c.l.b16 %v275
        %v618 = vpack.c.b16 %v617, %v616
        %620 = vmatprep.subr.bf16.mxu0 0
        %621 = vmatpush1.bf16.msra.mxu0 %v618
        %622 = vmatprep.subr.bf16.mxu0 0
        %623 = vmatpush1.bf16.msra.mxu0 0
        %624 = vmatprep.subr.bf16.mxu0 0
        %625 = vmatpush1.bf16.msra.mxu0 0
        %626 = vmatprep.subr.bf16.mxu0 0
        %627 = vmatpush1.bf16.msra.mxu0 0
        %628 = vmatprep.subr.bf16.mxu0 0
        %629 = vmatpush1.bf16.msra.mxu0 0
        %630 = vmatprep.subr.bf16.mxu0 0
        %631 = vmatpush1.bf16.msra.mxu0 0
        %632 = vmatprep.subr.bf16.mxu0 0
        %633 = vmatpush1.bf16.msra.mxu0 0
        %634 = vmatprep.subr.bf16.mxu0 0
        %635 = vmatpush1.bf16.msra.mxu0 0
        %636 = vmatprep.subr.bf16.mxu0 0
        %637 = vmatpush1.bf16.msra.mxu0 0
        %638 = vmatprep.subr.bf16.mxu0 0
        %639 = vmatpush1.bf16.msra.mxu0 0
        %640 = vmatprep.subr.bf16.mxu0 0
        %641 = vmatpush1.bf16.msra.mxu0 0
        %642 = vmatprep.subr.bf16.mxu0 0
        %643 = vmatpush1.bf16.msra.mxu0 0
        %644 = vmatprep.subr.bf16.mxu0 0
        %645 = vmatpush1.bf16.msra.mxu0 0
        %646 = vmatprep.subr.bf16.mxu0 0
        %647 = vmatpush1.bf16.msra.mxu0 0
        %648 = vmatprep.subr.bf16.mxu0 0
        %649 = vmatpush1.bf16.msra.mxu0 0
        %650 = vmatprep.subr.bf16.mxu0 0
        %651 = vmatpush1.bf16.msra.mxu0 0
        %652 = vmatprep.mubr.bf16.mxu0 0
        %653 = vmatmul.mubr.bf16.gmra.mrb[0].mxu0 %v572
        %v654 = vpop.f32.mrb[0].mxu0
        %v655 = vadd.f32 %v555, %v654
        %v656 = vpop.f32.mrb[0].mxu0
        %v657 = vpop.f32.mrb[0].mxu0
        %v658 = vpop.f32.mrb[0].mxu0
        %659 = vdwg.mxu0
        %v662 = vunpack.c.l.b16 %v276
        %v663 = vunpack.c.l.b16 %v277
        %v664 = vpack.c.b16 %v663, %v662
        %666 = vmatprep.subr.bf16.mxu0 0
        %667 = vmatpush1.bf16.msra.mxu0 %v664
        %668 = vmatprep.subr.bf16.mxu0 0
        %669 = vmatpush1.bf16.msra.mxu0 0
        %670 = vmatprep.subr.bf16.mxu0 0
        %671 = vmatpush1.bf16.msra.mxu0 0
        %672 = vmatprep.subr.bf16.mxu0 0
        %673 = vmatpush1.bf16.msra.mxu0 0
        %674 = vmatprep.subr.bf16.mxu0 0
        %675 = vmatpush1.bf16.msra.mxu0 0
        %676 = vmatprep.subr.bf16.mxu0 0
        %677 = vmatpush1.bf16.msra.mxu0 0
        %678 = vmatprep.subr.bf16.mxu0 0
        %679 = vmatpush1.bf16.msra.mxu0 0
        %680 = vmatprep.subr.bf16.mxu0 0
        %681 = vmatpush1.bf16.msra.mxu0 0
        %682 = vmatprep.subr.bf16.mxu0 0
        %683 = vmatpush1.bf16.msra.mxu0 0
        %684 = vmatprep.subr.bf16.mxu0 0
        %685 = vmatpush1.bf16.msra.mxu0 0
        %686 = vmatprep.subr.bf16.mxu0 0
        %687 = vmatpush1.bf16.msra.mxu0 0
        %688 = vmatprep.subr.bf16.mxu0 0
        %689 = vmatpush1.bf16.msra.mxu0 0
        %690 = vmatprep.subr.bf16.mxu0 0
        %691 = vmatpush1.bf16.msra.mxu0 0
        %692 = vmatprep.subr.bf16.mxu0 0
        %693 = vmatpush1.bf16.msra.mxu0 0
        %694 = vmatprep.subr.bf16.mxu0 0
        %695 = vmatpush1.bf16.msra.mxu0 0
        %696 = vmatprep.subr.bf16.mxu0 0
        %697 = vmatpush1.bf16.msra.mxu0 0
        %698 = vmatprep.mubr.bf16.mxu0 0
        %699 = vmatmul.mubr.bf16.gmra.mrb[0].mxu0 %v572
        %v700 = vpop.f32.mrb[0].mxu0
        %v701 = vadd.f32 %v559, %v700
        %v702 = vpop.f32.mrb[0].mxu0
        %v703 = vpop.f32.mrb[0].mxu0
        %v704 = vpop.f32.mrb[0].mxu0
        %705 = vdwg.mxu0
        %v708 = vunpack.c.l.b16 %v278
        %v709 = vunpack.c.l.b16 %v279
        %v710 = vpack.c.b16 %v709, %v708
        %712 = vmatprep.subr.bf16.mxu0 0
        %713 = vmatpush1.bf16.msra.mxu0 %v710
        %714 = vmatprep.subr.bf16.mxu0 0
        %715 = vmatpush1.bf16.msra.mxu0 0
        %716 = vmatprep.subr.bf16.mxu0 0
        %717 = vmatpush1.bf16.msra.mxu0 0
        %718 = vmatprep.subr.bf16.mxu0 0
        %719 = vmatpush1.bf16.msra.mxu0 0
        %720 = vmatprep.subr.bf16.mxu0 0
        %721 = vmatpush1.bf16.msra.mxu0 0
        %722 = vmatprep.subr.bf16.mxu0 0
        %723 = vmatpush1.bf16.msra.mxu0 0
        %724 = vmatprep.subr.bf16.mxu0 0
        %725 = vmatpush1.bf16.msra.mxu0 0
        %726 = vmatprep.subr.bf16.mxu0 0
        %727 = vmatpush1.bf16.msra.mxu0 0
        %728 = vmatprep.subr.bf16.mxu0 0
        %729 = vmatpush1.bf16.msra.mxu0 0
        %730 = vmatprep.subr.bf16.mxu0 0
        %731 = vmatpush1.bf16.msra.mxu0 0
        %732 = vmatprep.subr.bf16.mxu0 0
        %733 = vmatpush1.bf16.msra.mxu0 0
        %734 = vmatprep.subr.bf16.mxu0 0
        %735 = vmatpush1.bf16.msra.mxu0 0
        %736 = vmatprep.subr.bf16.mxu0 0
        %737 = vmatpush1.bf16.msra.mxu0 0
        %738 = vmatprep.subr.bf16.mxu0 0
        %739 = vmatpush1.bf16.msra.mxu0 0
        %740 = vmatprep.subr.bf16.mxu0 0
        %741 = vmatpush1.bf16.msra.mxu0 0
        %742 = vmatprep.subr.bf16.mxu0 0
        %743 = vmatpush1.bf16.msra.mxu0 0
        %744 = vmatprep.mubr.bf16.mxu0 0
        %745 = vmatmul.mubr.bf16.gmra.mrb[0].mxu0 %v572
        %v746 = vpop.f32.mrb[0].mxu0
        %v747 = vadd.f32 %v563, %v746
        %v748 = vpop.f32.mrb[0].mxu0
        %v749 = vpop.f32.mrb[0].mxu0
        %v750 = vpop.f32.mrb[0].mxu0
        %751 = vdwg.mxu0
        %v752 = vlaneseq
        %v753 = vshrl.u32 %v752, 7
        %v754 = vsub.s32 2, %v753
        %v755 = vrot.slane %v316, %v754
        %v756 = vlaneseq
        %v757 = vshrl.u32 %v756, 7
        %v758 = vsub.s32 2, %v757
        %v759 = vrot.slane %v317, %v758
        %v760 = vlaneseq
        %v761 = vshrl.u32 %v760, 7
        %v762 = vsub.s32 2, %v761
        %v763 = vrot.slane %v318, %v762
        %v764 = vlaneseq
        %v765 = vshrl.u32 %v764, 7
        %v766 = vsub.s32 2, %v765
        %v767 = vrot.slane %v319, %v766
        %v770 = vunpack.c.l.b16 %v280
        %v771 = vunpack.c.l.b16 %v281
        %v772 = vpack.c.b16 %v771, %v770
        %774 = vmatprep.subr.bf16.mxu0 0
        %775 = vmatpush1.bf16.msra.mxu0 %v772
        %776 = vmatprep.subr.bf16.mxu0 0
        %777 = vmatpush1.bf16.msra.mxu0 0
        %778 = vmatprep.subr.bf16.mxu0 0
        %779 = vmatpush1.bf16.msra.mxu0 0
        %780 = vmatprep.subr.bf16.mxu0 0
        %781 = vmatpush1.bf16.msra.mxu0 0
        %782 = vmatprep.subr.bf16.mxu0 0
        %783 = vmatpush1.bf16.msra.mxu0 0
        %784 = vmatprep.subr.bf16.mxu0 0
        %785 = vmatpush1.bf16.msra.mxu0 0
        %786 = vmatprep.subr.bf16.mxu0 0
        %787 = vmatpush1.bf16.msra.mxu0 0
        %788 = vmatprep.subr.bf16.mxu0 0
        %789 = vmatpush1.bf16.msra.mxu0 0
        %790 = vmatprep.subr.bf16.mxu0 0
        %791 = vmatpush1.bf16.msra.mxu0 0
        %792 = vmatprep.subr.bf16.mxu0 0
        %793 = vmatpush1.bf16.msra.mxu0 0
        %794 = vmatprep.subr.bf16.mxu0 0
        %795 = vmatpush1.bf16.msra.mxu0 0
        %796 = vmatprep.subr.bf16.mxu0 0
        %797 = vmatpush1.bf16.msra.mxu0 0
        %798 = vmatprep.subr.bf16.mxu0 0
        %799 = vmatpush1.bf16.msra.mxu0 0
        %800 = vmatprep.subr.bf16.mxu0 0
        %801 = vmatpush1.bf16.msra.mxu0 0
        %802 = vmatprep.subr.bf16.mxu0 0
        %803 = vmatpush1.bf16.msra.mxu0 0
        %804 = vmatprep.subr.bf16.mxu0 0
        %805 = vmatpush1.bf16.msra.mxu0 0
        %806 = vmatprep.mubr.bf16.mxu0 0
        %807 = vmatmul.mubr.bf16.gmra.mrb[0].mxu0 %v572
        %v808 = vpop.f32.mrb[0].mxu0
        %v809 = vadd.f32 %v755, %v808
        %v810 = vpop.f32.mrb[0].mxu0
        %v811 = vpop.f32.mrb[0].mxu0
        %v812 = vpop.f32.mrb[0].mxu0
        %813 = vdwg.mxu0
        %v816 = vunpack.c.l.b16 %v282
        %v817 = vunpack.c.l.b16 %v283
        %v818 = vpack.c.b16 %v817, %v816
        %820 = vmatprep.subr.bf16.mxu0 0
        %821 = vmatpush1.bf16.msra.mxu0 %v818
        %822 = vmatprep.subr.bf16.mxu0 0
        %823 = vmatpush1.bf16.msra.mxu0 0
        %824 = vmatprep.subr.bf16.mxu0 0
        %825 = vmatpush1.bf16.msra.mxu0 0
        %826 = vmatprep.subr.bf16.mxu0 0
        %827 = vmatpush1.bf16.msra.mxu0 0
        %828 = vmatprep.subr.bf16.mxu0 0
        %829 = vmatpush1.bf16.msra.mxu0 0
        %830 = vmatprep.subr.bf16.mxu0 0
        %831 = vmatpush1.bf16.msra.mxu0 0
        %832 = vmatprep.subr.bf16.mxu0 0
        %833 = vmatpush1.bf16.msra.mxu0 0
        %834 = vmatprep.subr.bf16.mxu0 0
        %835 = vmatpush1.bf16.msra.mxu0 0
        %836 = vmatprep.subr.bf16.mxu0 0
        %837 = vmatpush1.bf16.msra.mxu0 0
        %838 = vmatprep.subr.bf16.mxu0 0
        %839 = vmatpush1.bf16.msra.mxu0 0
        %840 = vmatprep.subr.bf16.mxu0 0
        %841 = vmatpush1.bf16.msra.mxu0 0
        %842 = vmatprep.subr.bf16.mxu0 0
        %843 = vmatpush1.bf16.msra.mxu0 0
        %844 = vmatprep.subr.bf16.mxu0 0
        %845 = vmatpush1.bf16.msra.mxu0 0
        %846 = vmatprep.subr.bf16.mxu0 0
        %847 = vmatpush1.bf16.msra.mxu0 0
        %848 = vmatprep.subr.bf16.mxu0 0
        %849 = vmatpush1.bf16.msra.mxu0 0
        %850 = vmatprep.subr.bf16.mxu0 0
        %851 = vmatpush1.bf16.msra.mxu0 0
        %852 = vmatprep.mubr.bf16.mxu0 0
        %853 = vmatmul.mubr.bf16.gmra.mrb[0].mxu0 %v572
        %v854 = vpop.f32.mrb[0].mxu0
        %v855 = vadd.f32 %v759, %v854
        %v856 = vpop.f32.mrb[0].mxu0
        %v857 = vpop.f32.mrb[0].mxu0
        %v858 = vpop.f32.mrb[0].mxu0
        %859 = vdwg.mxu0
        %v862 = vunpack.c.l.b16 %v284
        %v863 = vunpack.c.l.b16 %v285
        %v864 = vpack.c.b16 %v863, %v862
        %866 = vmatprep.subr.bf16.mxu0 0
        %867 = vmatpush1.bf16.msra.mxu0 %v864
        %868 = vmatprep.subr.bf16.mxu0 0
        %869 = vmatpush1.bf16.msra.mxu0 0
        %870 = vmatprep.subr.bf16.mxu0 0
        %871 = vmatpush1.bf16.msra.mxu0 0
        %872 = vmatprep.subr.bf16.mxu0 0
        %873 = vmatpush1.bf16.msra.mxu0 0
        %874 = vmatprep.subr.bf16.mxu0 0
        %875 = vmatpush1.bf16.msra.mxu0 0
        %876 = vmatprep.subr.bf16.mxu0 0
        %877 = vmatpush1.bf16.msra.mxu0 0
        %878 = vmatprep.subr.bf16.mxu0 0
        %879 = vmatpush1.bf16.msra.mxu0 0
        %880 = vmatprep.subr.bf16.mxu0 0
        %881 = vmatpush1.bf16.msra.mxu0 0
        %882 = vmatprep.subr.bf16.mxu0 0
        %883 = vmatpush1.bf16.msra.mxu0 0
        %884 = vmatprep.subr.bf16.mxu0 0
        %885 = vmatpush1.bf16.msra.mxu0 0
        %886 = vmatprep.subr.bf16.mxu0 0
        %887 = vmatpush1.bf16.msra.mxu0 0
        %888 = vmatprep.subr.bf16.mxu0 0
        %889 = vmatpush1.bf16.msra.mxu0 0
        %890 = vmatprep.subr.bf16.mxu0 0
        %891 = vmatpush1.bf16.msra.mxu0 0
        %892 = vmatprep.subr.bf16.mxu0 0
        %893 = vmatpush1.bf16.msra.mxu0 0
        %894 = vmatprep.subr.bf16.mxu0 0
        %895 = vmatpush1.bf16.msra.mxu0 0
        %896 = vmatprep.subr.bf16.mxu0 0
        %897 = vmatpush1.bf16.msra.mxu0 0
        %898 = vmatprep.mubr.bf16.mxu0 0
        %899 = vmatmul.mubr.bf16.gmra.mrb[0].mxu0 %v572
        %v900 = vpop.f32.mrb[0].mxu0
        %v901 = vadd.f32 %v763, %v900
        %v902 = vpop.f32.mrb[0].mxu0
        %v903 = vpop.f32.mrb[0].mxu0
        %v904 = vpop.f32.mrb[0].mxu0
        %905 = vdwg.mxu0
        %v908 = vunpack.c.l.b16 %v286
        %v909 = vunpack.c.l.b16 %v287
        %v910 = vpack.c.b16 %v909, %v908
        %912 = vmatprep.subr.bf16.mxu0 0
        %913 = vmatpush1.bf16.msra.mxu0 %v910
        %914 = vmatprep.subr.bf16.mxu0 0
        %915 = vmatpush1.bf16.msra.mxu0 0
        %916 = vmatprep.subr.bf16.mxu0 0
        %917 = vmatpush1.bf16.msra.mxu0 0
        %918 = vmatprep.subr.bf16.mxu0 0
        %919 = vmatpush1.bf16.msra.mxu0 0
        %920 = vmatprep.subr.bf16.mxu0 0
        %921 = vmatpush1.bf16.msra.mxu0 0
        %922 = vmatprep.subr.bf16.mxu0 0
        %923 = vmatpush1.bf16.msra.mxu0 0
        %924 = vmatprep.subr.bf16.mxu0 0
        %925 = vmatpush1.bf16.msra.mxu0 0
        %926 = vmatprep.subr.bf16.mxu0 0
        %927 = vmatpush1.bf16.msra.mxu0 0
        %928 = vmatprep.subr.bf16.mxu0 0
        %929 = vmatpush1.bf16.msra.mxu0 0
        %930 = vmatprep.subr.bf16.mxu0 0
        %931 = vmatpush1.bf16.msra.mxu0 0
        %932 = vmatprep.subr.bf16.mxu0 0
        %933 = vmatpush1.bf16.msra.mxu0 0
        %934 = vmatprep.subr.bf16.mxu0 0
        %935 = vmatpush1.bf16.msra.mxu0 0
        %936 = vmatprep.subr.bf16.mxu0 0
        %937 = vmatpush1.bf16.msra.mxu0 0
        %938 = vmatprep.subr.bf16.mxu0 0
        %939 = vmatpush1.bf16.msra.mxu0 0
        %940 = vmatprep.subr.bf16.mxu0 0
        %941 = vmatpush1.bf16.msra.mxu0 0
        %942 = vmatprep.subr.bf16.mxu0 0
        %943 = vmatpush1.bf16.msra.mxu0 0
        %944 = vmatprep.mubr.bf16.mxu0 0
        %945 = vmatmul.mubr.bf16.gmra.mrb[0].mxu0 %v572
        %v946 = vpop.f32.mrb[0].mxu0
        %v947 = vadd.f32 %v767, %v946
        %v948 = vpop.f32.mrb[0].mxu0
        %v949 = vpop.f32.mrb[0].mxu0
        %v950 = vpop.f32.mrb[0].mxu0
        %951 = vdwg.mxu0
        %v952 = vpack.c.bf16 %v387, %v387
        %v953 = vpack.c.bf16 %v439, %v439
        %v954 = vpack.c.bf16 %v491, %v491
        %v955 = vpack.c.bf16 %v543, %v543
        %v956 = vpack.c.bf16 %v609, %v609
        %v957 = vpack.c.bf16 %v655, %v655
        %v958 = vpack.c.bf16 %v701, %v701
        %v959 = vpack.c.bf16 %v747, %v747
        %v960 = vld [vmem:[%s250] sm:$0x1]
        %v962 = vlaneseq
        %v963 = vshrl.u32 %v962, 7
        %v964 = vsub.s32 0, %v963
        %v965 = vrot.slane %v960, %v964
        %vm967 = vcmask 64512
        %v969 = vsel %vm967, %v952, 0
        %v972 = vsel %vm967, %v956, 0
        %974 = vmatprep.subr.bf16.mxu0 0
        %975 = vmatpush1.bf16.xpose.msra.mxu0 %v972
        %976 = vmatprep.subr.bf16.mxu0 0
        %977 = vmatpush1.bf16.xpose.msra.mxu0 0
        %978 = vmatprep.subr.bf16.mxu0 0
        %979 = vmatpush1.bf16.xpose.msra.mxu0 0
        %980 = vmatprep.subr.bf16.mxu0 0
        %981 = vmatpush1.bf16.xpose.msra.mxu0 0
        %982 = vmatprep.subr.bf16.mxu0 0
        %983 = vmatpush1.bf16.xpose.msra.mxu0 0
        %984 = vmatprep.subr.bf16.mxu0 0
        %985 = vmatpush1.bf16.xpose.msra.mxu0 0
        %986 = vmatprep.subr.bf16.mxu0 0
        %987 = vmatpush1.bf16.xpose.msra.mxu0 0
        %988 = vmatprep.subr.bf16.mxu0 0
        %989 = vmatpush1.bf16.xpose.msra.mxu0 0
        %990 = vmatprep.subr.bf16.mxu0 0
        %991 = vmatpush1.bf16.xpose.msra.mxu0 0
        %992 = vmatprep.subr.bf16.mxu0 0
        %993 = vmatpush1.bf16.xpose.msra.mxu0 0
        %994 = vmatprep.subr.bf16.mxu0 0
        %995 = vmatpush1.bf16.xpose.msra.mxu0 0
        %996 = vmatprep.subr.bf16.mxu0 0
        %997 = vmatpush1.bf16.xpose.msra.mxu0 0
        %998 = vmatprep.subr.bf16.mxu0 0
        %999 = vmatpush1.bf16.xpose.msra.mxu0 0
        %1000 = vmatprep.subr.bf16.mxu0 0
        %1001 = vmatpush1.bf16.xpose.msra.mxu0 0
        %1002 = vmatprep.subr.bf16.mxu0 0
        %1003 = vmatpush1.bf16.xpose.msra.mxu0 0
        %1004 = vmatprep.subr.bf16.mxu0 0
        %1005 = vmatpush1.bf16.xpose.msra.mxu0 0
        %1006 = vmatprep.mubr.bf16.mxu0 0
        %1007 = vmatmul.mubr.bf16.gmra.mrb[0].mxu0 %v969
        %v1008 = vpop.f32.mrb[0].mxu0
        %v1009 = vadd.f32 %v965, %v1008
        %v1010 = vpop.f32.mrb[0].mxu0
        %v1011 = vpop.f32.mrb[0].mxu0
        %v1012 = vpop.f32.mrb[0].mxu0
        %1013 = vdwg.mxu0
        %v1015 = vsel %vm967, %v953, 0
        %v1018 = vsel %vm967, %v957, 0
        %1020 = vmatprep.subr.bf16.mxu0 0
        %1021 = vmatpush1.bf16.xpose.msra.mxu0 %v1018
        %1022 = vmatprep.subr.bf16.mxu0 0
        %1023 = vmatpush1.bf16.xpose.msra.mxu0 0
        %1024 = vmatprep.subr.bf16.mxu0 0
        %1025 = vmatpush1.bf16.xpose.msra.mxu0 0
        %1026 = vmatprep.subr.bf16.mxu0 0
        %1027 = vmatpush1.bf16.xpose.msra.mxu0 0
        %1028 = vmatprep.subr.bf16.mxu0 0
        %1029 = vmatpush1.bf16.xpose.msra.mxu0 0
        %1030 = vmatprep.subr.bf16.mxu0 0
        %1031 = vmatpush1.bf16.xpose.msra.mxu0 0
        %1032 = vmatprep.subr.bf16.mxu0 0
        %1033 = vmatpush1.bf16.xpose.msra.mxu0 0
        %1034 = vmatprep.subr.bf16.mxu0 0
        %1035 = vmatpush1.bf16.xpose.msra.mxu0 0
        %1036 = vmatprep.subr.bf16.mxu0 0
        %1037 = vmatpush1.bf16.xpose.msra.mxu0 0
        %1038 = vmatprep.subr.bf16.mxu0 0
        %1039 = vmatpush1.bf16.xpose.msra.mxu0 0
        %1040 = vmatprep.subr.bf16.mxu0 0
        %1041 = vmatpush1.bf16.xpose.msra.mxu0 0
        %1042 = vmatprep.subr.bf16.mxu0 0
        %1043 = vmatpush1.bf16.xpose.msra.mxu0 0
        %1044 = vmatprep.subr.bf16.mxu0 0
        %1045 = vmatpush1.bf16.xpose.msra.mxu0 0
        %1046 = vmatprep.subr.bf16.mxu0 0
        %1047 = vmatpush1.bf16.xpose.msra.mxu0 0
        %1048 = vmatprep.subr.bf16.mxu0 0
        %1049 = vmatpush1.bf16.xpose.msra.mxu0 0
        %1050 = vmatprep.subr.bf16.mxu0 0
        %1051 = vmatpush1.bf16.xpose.msra.mxu0 0
        %1052 = vmatprep.mubr.bf16.mxu0 0
        %1053 = vmatmul.mubr.bf16.gmra.mrb[0].mxu0 %v1015
        %v1054 = vpop.f32.mrb[0].mxu0
        %v1055 = vadd.f32 %v965, %v1054
        %v1056 = vpop.f32.mrb[0].mxu0
        %v1057 = vpop.f32.mrb[0].mxu0
        %v1058 = vpop.f32.mrb[0].mxu0
        %1059 = vdwg.mxu0
        %v1061 = vsel %vm967, %v954, 0
        %v1064 = vsel %vm967, %v958, 0
        %1066 = vmatprep.subr.bf16.mxu0 0
        %1067 = vmatpush1.bf16.xpose.msra.mxu0 %v1064
        %1068 = vmatprep.subr.bf16.mxu0 0
        %1069 = vmatpush1.bf16.xpose.msra.mxu0 0
        %1070 = vmatprep.subr.bf16.mxu0 0
        %1071 = vmatpush1.bf16.xpose.msra.mxu0 0
        %1072 = vmatprep.subr.bf16.mxu0 0
        %1073 = vmatpush1.bf16.xpose.msra.mxu0 0
        %1074 = vmatprep.subr.bf16.mxu0 0
        %1075 = vmatpush1.bf16.xpose.msra.mxu0 0
        %1076 = vmatprep.subr.bf16.mxu0 0
        %1077 = vmatpush1.bf16.xpose.msra.mxu0 0
        %1078 = vmatprep.subr.bf16.mxu0 0
        %1079 = vmatpush1.bf16.xpose.msra.mxu0 0
        %1080 = vmatprep.subr.bf16.mxu0 0
        %1081 = vmatpush1.bf16.xpose.msra.mxu0 0
        %1082 = vmatprep.subr.bf16.mxu0 0
        %1083 = vmatpush1.bf16.xpose.msra.mxu0 0
        %1084 = vmatprep.subr.bf16.mxu0 0
        %1085 = vmatpush1.bf16.xpose.msra.mxu0 0
        %1086 = vmatprep.subr.bf16.mxu0 0
        %1087 = vmatpush1.bf16.xpose.msra.mxu0 0
        %1088 = vmatprep.subr.bf16.mxu0 0
        %1089 = vmatpush1.bf16.xpose.msra.mxu0 0
        %1090 = vmatprep.subr.bf16.mxu0 0
        %1091 = vmatpush1.bf16.xpose.msra.mxu0 0
        %1092 = vmatprep.subr.bf16.mxu0 0
        %1093 = vmatpush1.bf16.xpose.msra.mxu0 0
        %1094 = vmatprep.subr.bf16.mxu0 0
        %1095 = vmatpush1.bf16.xpose.msra.mxu0 0
        %1096 = vmatprep.subr.bf16.mxu0 0
        %1097 = vmatpush1.bf16.xpose.msra.mxu0 0
        %1098 = vmatprep.mubr.bf16.mxu0 0
        %1099 = vmatmul.mubr.bf16.gmra.mrb[0].mxu0 %v1061
        %v1100 = vpop.f32.mrb[0].mxu0
        %v1101 = vadd.f32 %v965, %v1100
        %v1102 = vpop.f32.mrb[0].mxu0
        %v1103 = vpop.f32.mrb[0].mxu0
        %v1104 = vpop.f32.mrb[0].mxu0
        %1105 = vdwg.mxu0
        %v1107 = vsel %vm967, %v955, 0
        %v1110 = vsel %vm967, %v959, 0
        %1112 = vmatprep.subr.bf16.mxu0 0
        %1113 = vmatpush1.bf16.xpose.msra.mxu0 %v1110
        %1114 = vmatprep.subr.bf16.mxu0 0
        %1115 = vmatpush1.bf16.xpose.msra.mxu0 0
        %1116 = vmatprep.subr.bf16.mxu0 0
        %1117 = vmatpush1.bf16.xpose.msra.mxu0 0
        %1118 = vmatprep.subr.bf16.mxu0 0
        %1119 = vmatpush1.bf16.xpose.msra.mxu0 0
        %1120 = vmatprep.subr.bf16.mxu0 0
        %1121 = vmatpush1.bf16.xpose.msra.mxu0 0
        %1122 = vmatprep.subr.bf16.mxu0 0
        %1123 = vmatpush1.bf16.xpose.msra.mxu0 0
        %1124 = vmatprep.subr.bf16.mxu0 0
        %1125 = vmatpush1.bf16.xpose.msra.mxu0 0
        %1126 = vmatprep.subr.bf16.mxu0 0
        %1127 = vmatpush1.bf16.xpose.msra.mxu0 0
        %1128 = vmatprep.subr.bf16.mxu0 0
        %1129 = vmatpush1.bf16.xpose.msra.mxu0 0
        %1130 = vmatprep.subr.bf16.mxu0 0
        %1131 = vmatpush1.bf16.xpose.msra.mxu0 0
        %1132 = vmatprep.subr.bf16.mxu0 0
        %1133 = vmatpush1.bf16.xpose.msra.mxu0 0
        %1134 = vmatprep.subr.bf16.mxu0 0
        %1135 = vmatpush1.bf16.xpose.msra.mxu0 0
        %1136 = vmatprep.subr.bf16.mxu0 0
        %1137 = vmatpush1.bf16.xpose.msra.mxu0 0
        %1138 = vmatprep.subr.bf16.mxu0 0
        %1139 = vmatpush1.bf16.xpose.msra.mxu0 0
        %1140 = vmatprep.subr.bf16.mxu0 0
        %1141 = vmatpush1.bf16.xpose.msra.mxu0 0
        %1142 = vmatprep.subr.bf16.mxu0 0
        %1143 = vmatpush1.bf16.xpose.msra.mxu0 0
        %1144 = vmatprep.mubr.bf16.mxu0 0
        %1145 = vmatmul.mubr.bf16.gmra.mrb[0].mxu0 %v1107
        %v1146 = vpop.f32.mrb[0].mxu0
        %v1147 = vadd.f32 %v965, %v1146
        %v1148 = vpop.f32.mrb[0].mxu0
        %v1149 = vpop.f32.mrb[0].mxu0
        %v1150 = vpop.f32.mrb[0].mxu0
        %1151 = vdwg.mxu0
        %v1152 = vsel %vm967, %v1009, -inf
        %1153 = vmax.xlane.f32.xlu0 %v1152
        %v1154 = vpop.xlane.xlu0 %1153
        %v1155 = vsel %vm967, %v1055, -inf
        %1156 = vmax.xlane.f32.xlu0 %v1155
        %v1157 = vpop.xlane.xlu0 %1156
        %v1158 = vsel %vm967, %v1101, -inf
        %1159 = vmax.xlane.f32.xlu0 %v1158
        %v1160 = vpop.xlane.xlu0 %1159
        %v1161 = vsel %vm967, %v1147, -inf
        %1162 = vmax.xlane.f32.xlu0 %v1161
        %v1163 = vpop.xlane.xlu0 %1162
        %v1164 = vsub.f32 %v1009, %v1154
        %v1165 = vsub.f32 %v1055, %v1157
        %v1166 = vsub.f32 %v1101, %v1160
        %v1167 = vsub.f32 %v1147, %v1163
        %v1168 = vmul.f32 %v1164, 1.442695
        %v1169 = vpow.pop %v1168
        %v1170 = vmul.f32 %v1165, 1.442695
        %v1171 = vpow.pop %v1170
        %v1172 = vmul.f32 %v1166, 1.442695
        %v1173 = vpow.pop %v1172
        %v1174 = vmul.f32 %v1167, 1.442695
        %v1175 = vpow.pop %v1174
        %v1176 = vsel %vm967, %v1169, 0.0
        %1177 = vadd.xlane.f32.xlu0 %v1176
        %v1178 = vpop.xlane.xlu0 %1177
        %v1179 = vsel %vm967, %v1171, 0.0
        %1180 = vadd.xlane.f32.xlu0 %v1179
        %v1181 = vpop.xlane.xlu0 %1180
        %v1182 = vsel %vm967, %v1173, 0.0
        %1183 = vadd.xlane.f32.xlu0 %v1182
        %v1184 = vpop.xlane.xlu0 %1183
        %v1185 = vsel %vm967, %v1175, 0.0
        %1186 = vadd.xlane.f32.xlu0 %v1185
        %v1187 = vpop.xlane.xlu0 %1186
        %v1188 = vrcp.pop %v1178
        %v1189 = vmul.f32 %v1169, %v1188
        %v1190 = vrcp.pop %v1181
        %v1191 = vmul.f32 %v1171, %v1190
        %v1192 = vrcp.pop %v1184
        %v1193 = vmul.f32 %v1173, %v1192
        %v1194 = vrcp.pop %v1187
        %v1195 = vmul.f32 %v1175, %v1194
        %v1196 = vpack.c.bf16 %v1189, %v1189
        %v1197 = vpack.c.bf16 %v1191, %v1191
        %v1198 = vpack.c.bf16 %v1193, %v1193
        %v1199 = vpack.c.bf16 %v1195, %v1195
        %v1200 = vpack.c.bf16 %v809, %v809
        %v1201 = vpack.c.bf16 %v855, %v855
        %v1202 = vpack.c.bf16 %v901, %v901
        %v1203 = vpack.c.bf16 %v947, %v947
        %v1205 = vsel %vm967, %v1196, 0
        %vm1207 = vcmask 1043456
        %v1209 = vsel %vm1207, %v1200, 0
        %1211 = vmatprep.subr.bf16.mxu0 0
        %1212 = vmatpush1.bf16.msra.mxu0 %v1209
        %1213 = vmatprep.subr.bf16.mxu0 0
        %1214 = vmatpush1.bf16.msra.mxu0 0
        %1215 = vmatprep.subr.bf16.mxu0 0
        %1216 = vmatpush1.bf16.msra.mxu0 0
        %1217 = vmatprep.subr.bf16.mxu0 0
        %1218 = vmatpush1.bf16.msra.mxu0 0
        %1219 = vmatprep.subr.bf16.mxu0 0
        %1220 = vmatpush1.bf16.msra.mxu0 0
        %1221 = vmatprep.subr.bf16.mxu0 0
        %1222 = vmatpush1.bf16.msra.mxu0 0
        %1223 = vmatprep.subr.bf16.mxu0 0
        %1224 = vmatpush1.bf16.msra.mxu0 0
        %1225 = vmatprep.subr.bf16.mxu0 0
        %1226 = vmatpush1.bf16.msra.mxu0 0
        %1227 = vmatprep.subr.bf16.mxu0 0
        %1228 = vmatpush1.bf16.msra.mxu0 0
        %1229 = vmatprep.subr.bf16.mxu0 0
        %1230 = vmatpush1.bf16.msra.mxu0 0
        %1231 = vmatprep.subr.bf16.mxu0 0
        %1232 = vmatpush1.bf16.msra.mxu0 0
        %1233 = vmatprep.subr.bf16.mxu0 0
        %1234 = vmatpush1.bf16.msra.mxu0 0
        %1235 = vmatprep.subr.bf16.mxu0 0
        %1236 = vmatpush1.bf16.msra.mxu0 0
        %1237 = vmatprep.subr.bf16.mxu0 0
        %1238 = vmatpush1.bf16.msra.mxu0 0
        %1239 = vmatprep.subr.bf16.mxu0 0
        %1240 = vmatpush1.bf16.msra.mxu0 0
        %1241 = vmatprep.subr.bf16.mxu0 0
        %1242 = vmatpush1.bf16.msra.mxu0 0
        %1243 = vmatprep.mubr.bf16.mxu0 0
        %1244 = vmatmul.mubr.bf16.gmra.mrb[0].mxu0 %v1205
        %v1245 = vpop.f32.mrb[0].mxu0
        %v1246 = vadd.f32 0.0, %v1245
        %v1247 = vpop.f32.mrb[0].mxu0
        %v1248 = vpop.f32.mrb[0].mxu0
        %v1249 = vpop.f32.mrb[0].mxu0
        %1250 = vdwg.mxu0
        %v1252 = vsel %vm967, %v1197, 0
        %v1255 = vsel %vm1207, %v1201, 0
        %1257 = vmatprep.subr.bf16.mxu0 0
        %1258 = vmatpush1.bf16.msra.mxu0 %v1255
        %1259 = vmatprep.subr.bf16.mxu0 0
        %1260 = vmatpush1.bf16.msra.mxu0 0
        %1261 = vmatprep.subr.bf16.mxu0 0
        %1262 = vmatpush1.bf16.msra.mxu0 0
        %1263 = vmatprep.subr.bf16.mxu0 0
        %1264 = vmatpush1.bf16.msra.mxu0 0
        %1265 = vmatprep.subr.bf16.mxu0 0
        %1266 = vmatpush1.bf16.msra.mxu0 0
        %1267 = vmatprep.subr.bf16.mxu0 0
        %1268 = vmatpush1.bf16.msra.mxu0 0
        %1269 = vmatprep.subr.bf16.mxu0 0
        %1270 = vmatpush1.bf16.msra.mxu0 0
        %1271 = vmatprep.subr.bf16.mxu0 0
        %1272 = vmatpush1.bf16.msra.mxu0 0
        %1273 = vmatprep.subr.bf16.mxu0 0
        %1274 = vmatpush1.bf16.msra.mxu0 0
        %1275 = vmatprep.subr.bf16.mxu0 0
        %1276 = vmatpush1.bf16.msra.mxu0 0
        %1277 = vmatprep.subr.bf16.mxu0 0
        %1278 = vmatpush1.bf16.msra.mxu0 0
        %1279 = vmatprep.subr.bf16.mxu0 0
        %1280 = vmatpush1.bf16.msra.mxu0 0
        %1281 = vmatprep.subr.bf16.mxu0 0
        %1282 = vmatpush1.bf16.msra.mxu0 0
        %1283 = vmatprep.subr.bf16.mxu0 0
        %1284 = vmatpush1.bf16.msra.mxu0 0
        %1285 = vmatprep.subr.bf16.mxu0 0
        %1286 = vmatpush1.bf16.msra.mxu0 0
        %1287 = vmatprep.subr.bf16.mxu0 0
        %1288 = vmatpush1.bf16.msra.mxu0 0
        %1289 = vmatprep.mubr.bf16.mxu0 0
        %1290 = vmatmul.mubr.bf16.gmra.mrb[0].mxu0 %v1252
        %v1291 = vpop.f32.mrb[0].mxu0
        %v1292 = vadd.f32 0.0, %v1291
        %v1293 = vpop.f32.mrb[0].mxu0
        %v1294 = vpop.f32.mrb[0].mxu0
        %v1295 = vpop.f32.mrb[0].mxu0
        %1296 = vdwg.mxu0
        %v1298 = vsel %vm967, %v1198, 0
        %v1301 = vsel %vm1207, %v1202, 0
        %1303 = vmatprep.subr.bf16.mxu0 0
        %1304 = vmatpush1.bf16.msra.mxu0 %v1301
        %1305 = vmatprep.subr.bf16.mxu0 0
        %1306 = vmatpush1.bf16.msra.mxu0 0
        %1307 = vmatprep.subr.bf16.mxu0 0
        %1308 = vmatpush1.bf16.msra.mxu0 0
        %1309 = vmatprep.subr.bf16.mxu0 0
        %1310 = vmatpush1.bf16.msra.mxu0 0
        %1311 = vmatprep.subr.bf16.mxu0 0
        %1312 = vmatpush1.bf16.msra.mxu0 0
        %1313 = vmatprep.subr.bf16.mxu0 0
        %1314 = vmatpush1.bf16.msra.mxu0 0
        %1315 = vmatprep.subr.bf16.mxu0 0
        %1316 = vmatpush1.bf16.msra.mxu0 0
        %1317 = vmatprep.subr.bf16.mxu0 0
        %1318 = vmatpush1.bf16.msra.mxu0 0
        %1319 = vmatprep.subr.bf16.mxu0 0
        %1320 = vmatpush1.bf16.msra.mxu0 0
        %1321 = vmatprep.subr.bf16.mxu0 0
        %1322 = vmatpush1.bf16.msra.mxu0 0
        %1323 = vmatprep.subr.bf16.mxu0 0
        %1324 = vmatpush1.bf16.msra.mxu0 0
        %1325 = vmatprep.subr.bf16.mxu0 0
        %1326 = vmatpush1.bf16.msra.mxu0 0
        %1327 = vmatprep.subr.bf16.mxu0 0
        %1328 = vmatpush1.bf16.msra.mxu0 0
        %1329 = vmatprep.subr.bf16.mxu0 0
        %1330 = vmatpush1.bf16.msra.mxu0 0
        %1331 = vmatprep.subr.bf16.mxu0 0
        %1332 = vmatpush1.bf16.msra.mxu0 0
        %1333 = vmatprep.subr.bf16.mxu0 0
        %1334 = vmatpush1.bf16.msra.mxu0 0
        %1335 = vmatprep.mubr.bf16.mxu0 0
        %1336 = vmatmul.mubr.bf16.gmra.mrb[0].mxu0 %v1298
        %v1337 = vpop.f32.mrb[0].mxu0
        %v1338 = vadd.f32 0.0, %v1337
        %v1339 = vpop.f32.mrb[0].mxu0
        %v1340 = vpop.f32.mrb[0].mxu0
        %v1341 = vpop.f32.mrb[0].mxu0
        %1342 = vdwg.mxu0
        %v1344 = vsel %vm967, %v1199, 0
        %v1347 = vsel %vm1207, %v1203, 0
        %1349 = vmatprep.subr.bf16.mxu0 0
        %1350 = vmatpush1.bf16.msra.mxu0 %v1347
        %1351 = vmatprep.subr.bf16.mxu0 0
        %1352 = vmatpush1.bf16.msra.mxu0 0
        %1353 = vmatprep.subr.bf16.mxu0 0
        %1354 = vmatpush1.bf16.msra.mxu0 0
        %1355 = vmatprep.subr.bf16.mxu0 0
        %1356 = vmatpush1.bf16.msra.mxu0 0
        %1357 = vmatprep.subr.bf16.mxu0 0
        %1358 = vmatpush1.bf16.msra.mxu0 0
        %1359 = vmatprep.subr.bf16.mxu0 0
        %1360 = vmatpush1.bf16.msra.mxu0 0
        %1361 = vmatprep.subr.bf16.mxu0 0
        %1362 = vmatpush1.bf16.msra.mxu0 0
        %1363 = vmatprep.subr.bf16.mxu0 0
        %1364 = vmatpush1.bf16.msra.mxu0 0
        %1365 = vmatprep.subr.bf16.mxu0 0
        %1366 = vmatpush1.bf16.msra.mxu0 0
        %1367 = vmatprep.subr.bf16.mxu0 0
        %1368 = vmatpush1.bf16.msra.mxu0 0
        %1369 = vmatprep.subr.bf16.mxu0 0
        %1370 = vmatpush1.bf16.msra.mxu0 0
        %1371 = vmatprep.subr.bf16.mxu0 0
        %1372 = vmatpush1.bf16.msra.mxu0 0
        %1373 = vmatprep.subr.bf16.mxu0 0
        %1374 = vmatpush1.bf16.msra.mxu0 0
        %1375 = vmatprep.subr.bf16.mxu0 0
        %1376 = vmatpush1.bf16.msra.mxu0 0
        %1377 = vmatprep.subr.bf16.mxu0 0
        %1378 = vmatpush1.bf16.msra.mxu0 0
        %1379 = vmatprep.subr.bf16.mxu0 0
        %1380 = vmatpush1.bf16.msra.mxu0 0
        %1381 = vmatprep.mubr.bf16.mxu0 0
        %1382 = vmatmul.mubr.bf16.gmra.mrb[0].mxu0 %v1344
        %v1383 = vpop.f32.mrb[0].mxu0
        %v1384 = vadd.f32 0.0, %v1383
        %v1385 = vpop.f32.mrb[0].mxu0
        %v1386 = vpop.f32.mrb[0].mxu0
        %v1387 = vpop.f32.mrb[0].mxu0
        %1388 = vdwg.mxu0
        %v1389 = vpack.c.bf16 %v1246, %v1246
        %v1390 = vpack.c.bf16 %v1292, %v1292
        %v1391 = vpack.c.bf16 %v1338, %v1338
        %v1392 = vpack.c.bf16 %v1384, %v1384
        %v1397 = vunpack.c.l.b16 %v288
        %v1398 = vunpack.c.l.b16 %v289
        %v1399 = vunpack.c.l.b16 %v290
        %v1400 = vunpack.c.l.b16 %v291
        %v1401 = vpack.c.b16 %v1398, %v1397
        %v1402 = vpack.c.b16 %v1400, %v1399
        %v1404 = vsel %vm967, %v1389, 0
        %v1407 = vsel %vm967, %v1401, 0
        %v1410 = vsel %vm967, %v1402, 0
        %1412 = vmatprep.subr.bf16.mxu0 0
        %1413 = vmatpush1.bf16.xpose.msra.mxu0 %v1407
        %1414 = vmatprep.subr.bf16.mxu0 0
        %1415 = vmatpush1.bf16.xpose.msra.mxu0 %v1410
        %1416 = vmatprep.subr.bf16.mxu0 0
        %1417 = vmatpush1.bf16.xpose.msra.mxu0 0
        %1418 = vmatprep.subr.bf16.mxu0 0
        %1419 = vmatpush1.bf16.xpose.msra.mxu0 0
        %1420 = vmatprep.subr.bf16.mxu0 0
        %1421 = vmatpush1.bf16.xpose.msra.mxu0 0
        %1422 = vmatprep.subr.bf16.mxu0 0
        %1423 = vmatpush1.bf16.xpose.msra.mxu0 0
        %1424 = vmatprep.subr.bf16.mxu0 0
        %1425 = vmatpush1.bf16.xpose.msra.mxu0 0
        %1426 = vmatprep.subr.bf16.mxu0 0
        %1427 = vmatpush1.bf16.xpose.msra.mxu0 0
        %1428 = vmatprep.subr.bf16.mxu0 0
        %1429 = vmatpush1.bf16.xpose.msra.mxu0 0
        %1430 = vmatprep.subr.bf16.mxu0 0
        %1431 = vmatpush1.bf16.xpose.msra.mxu0 0
        %1432 = vmatprep.subr.bf16.mxu0 0
        %1433 = vmatpush1.bf16.xpose.msra.mxu0 0
        %1434 = vmatprep.subr.bf16.mxu0 0
        %1435 = vmatpush1.bf16.xpose.msra.mxu0 0
        %1436 = vmatprep.subr.bf16.mxu0 0
        %1437 = vmatpush1.bf16.xpose.msra.mxu0 0
        %1438 = vmatprep.subr.bf16.mxu0 0
        %1439 = vmatpush1.bf16.xpose.msra.mxu0 0
        %1440 = vmatprep.subr.bf16.mxu0 0
        %1441 = vmatpush1.bf16.xpose.msra.mxu0 0
        %1442 = vmatprep.subr.bf16.mxu0 0
        %1443 = vmatpush1.bf16.xpose.msra.mxu0 0
        %1444 = vmatprep.mubr.bf16.mxu0 0
        %1445 = vmatmul.mubr.bf16.gmra.mrb[0].mxu0 %v1404
        %v1446 = vpop.f32.mrb[0].mxu0
        %v1447 = vadd.f32 0.0, %v1446
        %v1448 = vpop.f32.mrb[0].mxu0
        %v1449 = vpop.f32.mrb[0].mxu0
        %v1450 = vpop.f32.mrb[0].mxu0
        %1451 = vdwg.mxu0
        %v1456 = vunpack.c.l.b16 %v292
        %v1457 = vunpack.c.l.b16 %v293
        %v1458 = vunpack.c.l.b16 %v294
        %v1459 = vunpack.c.l.b16 %v295
        %v1460 = vpack.c.b16 %v1457, %v1456
        %v1461 = vpack.c.b16 %v1459, %v1458
        %v1463 = vsel %vm967, %v1390, 0
        %v1466 = vsel %vm967, %v1460, 0
        %v1469 = vsel %vm967, %v1461, 0
        %1471 = vmatprep.subr.bf16.mxu0 0
        %1472 = vmatpush1.bf16.xpose.msra.mxu0 %v1466
        %1473 = vmatprep.subr.bf16.mxu0 0
        %1474 = vmatpush1.bf16.xpose.msra.mxu0 %v1469
        %1475 = vmatprep.subr.bf16.mxu0 0
        %1476 = vmatpush1.bf16.xpose.msra.mxu0 0
        %1477 = vmatprep.subr.bf16.mxu0 0
        %1478 = vmatpush1.bf16.xpose.msra.mxu0 0
        %1479 = vmatprep.subr.bf16.mxu0 0
        %1480 = vmatpush1.bf16.xpose.msra.mxu0 0
        %1481 = vmatprep.subr.bf16.mxu0 0
        %1482 = vmatpush1.bf16.xpose.msra.mxu0 0
        %1483 = vmatprep.subr.bf16.mxu0 0
        %1484 = vmatpush1.bf16.xpose.msra.mxu0 0
        %1485 = vmatprep.subr.bf16.mxu0 0
        %1486 = vmatpush1.bf16.xpose.msra.mxu0 0
        %1487 = vmatprep.subr.bf16.mxu0 0
        %1488 = vmatpush1.bf16.xpose.msra.mxu0 0
        %1489 = vmatprep.subr.bf16.mxu0 0
        %1490 = vmatpush1.bf16.xpose.msra.mxu0 0
        %1491 = vmatprep.subr.bf16.mxu0 0
        %1492 = vmatpush1.bf16.xpose.msra.mxu0 0
        %1493 = vmatprep.subr.bf16.mxu0 0
        %1494 = vmatpush1.bf16.xpose.msra.mxu0 0
        %1495 = vmatprep.subr.bf16.mxu0 0
        %1496 = vmatpush1.bf16.xpose.msra.mxu0 0
        %1497 = vmatprep.subr.bf16.mxu0 0
        %1498 = vmatpush1.bf16.xpose.msra.mxu0 0
        %1499 = vmatprep.subr.bf16.mxu0 0
        %1500 = vmatpush1.bf16.xpose.msra.mxu0 0
        %1501 = vmatprep.subr.bf16.mxu0 0
        %1502 = vmatpush1.bf16.xpose.msra.mxu0 0
        %1503 = vmatprep.mubr.bf16.mxu0 0
        %1504 = vmatmul.mubr.bf16.gmra.mrb[0].mxu0 %v1463
        %v1505 = vpop.f32.mrb[0].mxu0
        %v1506 = vadd.f32 0.0, %v1505
        %v1507 = vpop.f32.mrb[0].mxu0
        %v1508 = vpop.f32.mrb[0].mxu0
        %v1509 = vpop.f32.mrb[0].mxu0
        %1510 = vdwg.mxu0
        %v1515 = vunpack.c.l.b16 %v296
        %v1516 = vunpack.c.l.b16 %v297
        %v1517 = vunpack.c.l.b16 %v298
        %v1518 = vunpack.c.l.b16 %v299
        %v1519 = vpack.c.b16 %v1516, %v1515
        %v1520 = vpack.c.b16 %v1518, %v1517
        %v1522 = vsel %vm967, %v1391, 0
        %v1525 = vsel %vm967, %v1519, 0
        %v1528 = vsel %vm967, %v1520, 0
        %1530 = vmatprep.subr.bf16.mxu0 0
        %1531 = vmatpush1.bf16.xpose.msra.mxu0 %v1525
        %1532 = vmatprep.subr.bf16.mxu0 0
        %1533 = vmatpush1.bf16.xpose.msra.mxu0 %v1528
        %1534 = vmatprep.subr.bf16.mxu0 0
        %1535 = vmatpush1.bf16.xpose.msra.mxu0 0
        %1536 = vmatprep.subr.bf16.mxu0 0
        %1537 = vmatpush1.bf16.xpose.msra.mxu0 0
        %1538 = vmatprep.subr.bf16.mxu0 0
        %1539 = vmatpush1.bf16.xpose.msra.mxu0 0
        %1540 = vmatprep.subr.bf16.mxu0 0
        %1541 = vmatpush1.bf16.xpose.msra.mxu0 0
        %1542 = vmatprep.subr.bf16.mxu0 0
        %1543 = vmatpush1.bf16.xpose.msra.mxu0 0
        %1544 = vmatprep.subr.bf16.mxu0 0
        %1545 = vmatpush1.bf16.xpose.msra.mxu0 0
        %1546 = vmatprep.subr.bf16.mxu0 0
        %1547 = vmatpush1.bf16.xpose.msra.mxu0 0
        %1548 = vmatprep.subr.bf16.mxu0 0
        %1549 = vmatpush1.bf16.xpose.msra.mxu0 0
        %1550 = vmatprep.subr.bf16.mxu0 0
        %1551 = vmatpush1.bf16.xpose.msra.mxu0 0
        %1552 = vmatprep.subr.bf16.mxu0 0
        %1553 = vmatpush1.bf16.xpose.msra.mxu0 0
        %1554 = vmatprep.subr.bf16.mxu0 0
        %1555 = vmatpush1.bf16.xpose.msra.mxu0 0
        %1556 = vmatprep.subr.bf16.mxu0 0
        %1557 = vmatpush1.bf16.xpose.msra.mxu0 0
        %1558 = vmatprep.subr.bf16.mxu0 0
        %1559 = vmatpush1.bf16.xpose.msra.mxu0 0
        %1560 = vmatprep.subr.bf16.mxu0 0
        %1561 = vmatpush1.bf16.xpose.msra.mxu0 0
        %1562 = vmatprep.mubr.bf16.mxu0 0
        %1563 = vmatmul.mubr.bf16.gmra.mrb[0].mxu0 %v1522
        %v1564 = vpop.f32.mrb[0].mxu0
        %v1565 = vadd.f32 0.0, %v1564
        %v1566 = vpop.f32.mrb[0].mxu0
        %v1567 = vpop.f32.mrb[0].mxu0
        %v1568 = vpop.f32.mrb[0].mxu0
        %1569 = vdwg.mxu0
        %v1574 = vunpack.c.l.b16 %v300
        %v1575 = vunpack.c.l.b16 %v301
        %v1576 = vunpack.c.l.b16 %v302
        %v1577 = vunpack.c.l.b16 %v303
        %v1578 = vpack.c.b16 %v1575, %v1574
        %v1579 = vpack.c.b16 %v1577, %v1576
        %v1581 = vsel %vm967, %v1392, 0
        %v1584 = vsel %vm967, %v1578, 0
        %v1587 = vsel %vm967, %v1579, 0
        %1589 = vmatprep.subr.bf16.mxu0 0
        %1590 = vmatpush1.bf16.xpose.msra.mxu0 %v1584
        %1591 = vmatprep.subr.bf16.mxu0 0
        %1592 = vmatpush1.bf16.xpose.msra.mxu0 %v1587
        %1593 = vmatprep.subr.bf16.mxu0 0
        %1594 = vmatpush1.bf16.xpose.msra.mxu0 0
        %1595 = vmatprep.subr.bf16.mxu0 0
        %1596 = vmatpush1.bf16.xpose.msra.mxu0 0
        %1597 = vmatprep.subr.bf16.mxu0 0
        %1598 = vmatpush1.bf16.xpose.msra.mxu0 0
        %1599 = vmatprep.subr.bf16.mxu0 0
        %1600 = vmatpush1.bf16.xpose.msra.mxu0 0
        %1601 = vmatprep.subr.bf16.mxu0 0
        %1602 = vmatpush1.bf16.xpose.msra.mxu0 0
        %1603 = vmatprep.subr.bf16.mxu0 0
        %1604 = vmatpush1.bf16.xpose.msra.mxu0 0
        %1605 = vmatprep.subr.bf16.mxu0 0
        %1606 = vmatpush1.bf16.xpose.msra.mxu0 0
        %1607 = vmatprep.subr.bf16.mxu0 0
        %1608 = vmatpush1.bf16.xpose.msra.mxu0 0
        %1609 = vmatprep.subr.bf16.mxu0 0
        %1610 = vmatpush1.bf16.xpose.msra.mxu0 0
        %1611 = vmatprep.subr.bf16.mxu0 0
        %1612 = vmatpush1.bf16.xpose.msra.mxu0 0
        %1613 = vmatprep.subr.bf16.mxu0 0
        %1614 = vmatpush1.bf16.xpose.msra.mxu0 0
        %1615 = vmatprep.subr.bf16.mxu0 0
        %1616 = vmatpush1.bf16.xpose.msra.mxu0 0
        %1617 = vmatprep.subr.bf16.mxu0 0
        %1618 = vmatpush1.bf16.xpose.msra.mxu0 0
        %1619 = vmatprep.subr.bf16.mxu0 0
        %1620 = vmatpush1.bf16.xpose.msra.mxu0 0
        %1621 = vmatprep.mubr.bf16.mxu0 0
        %1622 = vmatmul.mubr.bf16.gmra.mrb[0].mxu0 %v1581
        %v1623 = vpop.f32.mrb[0].mxu0
        %v1624 = vadd.f32 0.0, %v1623
        %v1625 = vpop.f32.mrb[0].mxu0
        %v1626 = vpop.f32.mrb[0].mxu0
        %v1627 = vpop.f32.mrb[0].mxu0
        %1628 = vdwg.mxu0
        %v1629 = vsel %vm348, %v1447, 0.0
        %v1630 = vsel %vm348, %v1506, 0.0
        %v1631 = vadd.f32 %v1629, %v1630
        %v1632 = vsel %vm348, %v1565, 0.0
        %v1633 = vadd.f32 %v1631, %v1632
        %v1634 = vsel %vm348, %v1624, 0.0
        %v1635 = vadd.f32 %v1633, %v1634
        %v1636 = vld [vmem:[%s4] sm:$0x1]
        %v1637 = vlaneseq
        %v1638 = vshrl.u32 %v1637, 7
        %v1639 = vsub.s32 0, %v1638
        %v1640 = vrot.slane %v1636, %v1639
        %v1641 = vadd.f32 %v1635, %v1640
        %v1642 = vadd.f32 %v1641, %v252
        %v1643 = vsel %vm348, %v1642, 0.0
        %1644 = vadd.xlane.f32.xlu0 %v1643
        %v1645 = vpop.xlane.xlu0 %1644
        %v1646 = vrcp.pop 32.0
        %v1647 = vmul.f32 %v1645, %v1646
        %v1648 = vsub.f32 %v1642, %v1647
        %v1649 = vmul.f32 %v1648, %v1648
        %v1650 = vsel %vm348, %v1649, 0.0
        %1651 = vadd.xlane.f32.xlu0 %v1650
        %v1652 = vpop.xlane.xlu0 %1651
        %v1653 = vmul.f32 %v1652, %v1646
        %v1654 = vadd.f32 %v1653, 1e-12
        %v1655 = vrsqrt.pop %v1654
        %v1656 = vmul.f32 %v1648, %v1655
        %v1657 = vld [vmem:[%s4 + $0x1] sm:$0x1]
        %v1658 = vlaneseq
        %v1659 = vshrl.u32 %v1658, 7
        %v1660 = vsub.s32 0, %v1659
        %v1661 = vrot.slane %v1657, %v1660
        %v1662 = vmul.f32 %v1656, %v1661
        %v1663 = vld [vmem:[%s4 + $0x2] sm:$0x1]
        %v1664 = vlaneseq
        %v1665 = vshrl.u32 %v1664, 7
        %v1666 = vsub.s32 0, %v1665
        %v1667 = vrot.slane %v1663, %v1666
        %v1668 = vadd.f32 %v1662, %v1667
        %1669 = vst.msk [vmem:[%s239] sm:$0xff] %vm348, %v1668
        %s1670 = sand.u32 %s147, 1
        %s1671 = scalar_lea.sflag [#allocation3], %s1670
        %s1672 = sand.u32 %s147, 1
        %s1673 = smul.addr %s1672, 8
        %s1674 = scalar_lea.vmem [#allocation2], %s1673
        // Predicated region
        $region41: #{inject_cross_attention_forward.1} parent=39 // pred_check
          %p1675 = pneg %p157
        $region42: #{inject_cross_attention_forward.1} parent=39 // pred_check_branch
          %1677 = sbr.rel (%p1675) target = $region44
        $region43: #{inject_cross_attention_forward.1} parent=39 // pred_region
          %s1679 = ssub.s32 128, 128
          %1680 = vsyncadd %s1671, %s1679
          %s1681 = smul.addr %s19, 128
          %s1682 = scalar_lea.hbm %s5, %s1681
          %s1684 = sshll.u32 %s1674, 4
          %s1685 = int_to_ptr.vmem [resolvable:$true] %s1684
          %1687 = dma.vmem_to_hbm [thread:$0]  %s1685, 128, %s1682, %s1671
        $region44: #{inject_cross_attention_forward.1} parent=39 // pred_fallthru
          _
      $region40: #{inject_cross_attention_forward.1} parent=5 // pred_fallthru
        _
      %p1688 = scmp.le.s32.totalorder 2, %s14
      // Predicated region
      $region45: #{inject_cross_attention_forward.1} parent=5 // pred_check
        %p1689 = pneg %p1688
      $region46: #{inject_cross_attention_forward.1} parent=5 // pred_check_branch
        %1691 = sbr.rel (%p1689) target = $region48
      $region47: #{inject_cross_attention_forward.1} parent=5 // pred_region
        %s1692 = ssub.s32 %s14, 2
        // Predicated region
        $region49: #{inject_cross_attention_forward.1} parent=47 // pred_check
          %p1693 = pneg %p163
        $region50: #{inject_cross_attention_forward.1} parent=47 // pred_check_branch
          %1695 = sbr.rel (%p1693) target = $region52
        $region51: #{inject_cross_attention_forward.1} parent=47 // pred_region
          %s1696 = sand.u32 %s148, 1
          %s1697 = scalar_lea.sflag [#allocation3], %s1696
          %s1698 = sand.u32 %s148, 1
          %s1699 = smul.addr %s1698, 8
          %s1700 = scalar_lea.vmem [#allocation2], %s1699
          %1701 = dma.done %s1697, 128
        $region52: #{inject_cross_attention_forward.1} parent=47 // pred_fallthru
          _
      $region48: #{inject_cross_attention_forward.1} parent=5 // pred_fallthru
        _
    $region6: #{inject_cross_attention_forward.1} parent=1 // loop_footer
      %s18 = sadd.s32 1, %s14
    $region7: #{inject_cross_attention_forward.1} parent=1 // loop_footer_branch
      %13 = sbr.rel target = $region3
    $region8: #{inject_cross_attention_forward.1} parent=1 // loop_exit
      _
    %1702 = vsyncpa [#allocation3], 1
    %s1703 = scalar_lea.sflag [#allocation3], 1
    %1704 = vsyncpa %s1703, 1

</llo_original>
